<compile_context>
chip_gen: v5e
topology: v5e:2x2
jax: 0.10.0
libtpu: 0.0.40
codegen_flags: <defaults>
</compile_context>

<pallas_src>
import functools

import jax
import jax.numpy as jnp
from jax.experimental import pallas as pl
from jax.experimental.pallas import tpu as pltpu


def _round_up(x, m):
    return (x + m - 1) // m * m


def _cpad(c):
    return _round_up(c, 128)


# Explicit scoped-VMEM budget: safe on v5e/v6e (128 MiB physical) and v7x
# (64 MiB physical); all kernels below use well under this.
_VMEM_LIMIT = 32 * 1024 * 1024


# ------------------------------------------------------------------
# Fused matmul kernel:  act((A @ B) * scale + shift [+ residual])
# ------------------------------------------------------------------
def _mm_kernel(a_ref, b_ref, s_ref, t_ref, o_ref, acc_ref, *, act):
    k = pl.program_id(2)

    @pl.when(k == 0)
    def _():
        acc_ref[...] = jnp.zeros_like(acc_ref)

    acc_ref[...] += jnp.dot(a_ref[...], b_ref[...],
                            preferred_element_type=jnp.float32)

    @pl.when(k == pl.num_programs(2) - 1)
    def _():
        y = acc_ref[...] * s_ref[...] + t_ref[...]
        if act == "relu":
            y = jnp.maximum(y, 0.0)
        elif act == "tanh":
            y = jnp.tanh(y)
        o_ref[...] = y.astype(o_ref.dtype)


def _mm_res_kernel(a_ref, b_ref, s_ref, t_ref, r_ref, o_ref, acc_ref, *, act):
    k = pl.program_id(2)

    @pl.when(k == 0)
    def _():
        acc_ref[...] = jnp.zeros_like(acc_ref)

    acc_ref[...] += jnp.dot(a_ref[...], b_ref[...],
                            preferred_element_type=jnp.float32)

    @pl.when(k == pl.num_programs(2) - 1)
    def _():
        y = (acc_ref[...] * s_ref[...] + t_ref[...]
             + r_ref[...].astype(jnp.float32))
        if act == "relu":
            y = jnp.maximum(y, 0.0)
        elif act == "tanh":
            y = jnp.tanh(y)
        o_ref[...] = y.astype(o_ref.dtype)


@functools.lru_cache(maxsize=None)
def _build_fused_matmul(Mp, K, N, tm, tk, tn, act, has_res, out_dtype):
    a_spec = pl.BlockSpec((tm, tk), lambda i, j, k: (i, k))
    b_spec = pl.BlockSpec((tk, tn), lambda i, j, k: (k, j))
    v_spec = pl.BlockSpec((1, tn), lambda i, j, k: (0, j))
    o_spec = pl.BlockSpec((tm, tn), lambda i, j, k: (i, j))
    if has_res:
        kern = functools.partial(_mm_res_kernel, act=act)
        in_specs = [a_spec, b_spec, v_spec, v_spec,
                    pl.BlockSpec((tm, tn), lambda i, j, k: (i, j))]
    else:
        kern = functools.partial(_mm_kernel, act=act)
        in_specs = [a_spec, b_spec, v_spec, v_spec]
    fn = pl.pallas_call(
        kern,
        out_shape=jax.ShapeDtypeStruct((Mp, N), out_dtype),
        grid_spec=pltpu.PrefetchScalarGridSpec(
            num_scalar_prefetch=0,
            grid=(Mp // tm, N // tn, K // tk),
            in_specs=in_specs,
            out_specs=o_spec,
            scratch_shapes=[pltpu.VMEM((tm, tn), jnp.float32)],
        ),
        compiler_params=pltpu.CompilerParams(
            dimension_semantics=("parallel", "parallel", "arbitrary"),
            vmem_limit_bytes=_VMEM_LIMIT),
    )
    return jax.jit(fn)


def _pick_m_tile(M, pref=256):
    if M <= pref:
        Mp = _round_up(M, 8)
        return Mp, Mp
    for t in (pref, 128):
        if M % t == 0:
            return M, t
    Mp = _round_up(M, 128)
    return Mp, 128


def _pick_n_tile(N, m_blocks):
    # v7x has 2 TensorCores sharded over the parallel grid axes: when there is
    # only one M block, prefer tn=128 so the N axis still yields >=2 blocks.
    if m_blocks <= 1 and N >= 256 and N % 128 == 0:
        return 128
    if N % 256 == 0:
        return 256
    if N % 128 == 0:
        return 128
    return N


def _pick_k_tile(K):
    # Cap tk at 512: keeps double-buffered A/B tiles small (v5e has a 16 MiB
    # default scoped-VMEM budget) and lets the B-tile DMA pipeline behind MXU.
    if K <= 512:
        return K
    for t in (512, 256, 128):
        if K % t == 0:
            return t
    return K


def fused_matmul(a, b, scale, shift, residual=None, act="none",
                 out_dtype=jnp.bfloat16):
    """C = act((A @ B) * scale + shift [+ residual]); bf16 MXU, f32 accumulate."""
    M, K = a.shape
    K2, N = b.shape
    assert K == K2
    Mp, tm = _pick_m_tile(M)
    tn = _pick_n_tile(N, Mp // tm)
    tk = _pick_k_tile(K)
    assert Mp % tm == 0 and N % tn == 0 and K % tk == 0
    a = a.astype(jnp.bfloat16)
    b = b.astype(jnp.bfloat16)
    if Mp != M:
        a = jnp.pad(a, ((0, Mp - M), (0, 0)))
    s2 = scale.astype(jnp.float32).reshape(1, N)
    t2 = shift.astype(jnp.float32).reshape(1, N)
    args = [a, b, s2, t2]
    if residual is not None:
        r = residual.astype(jnp.bfloat16)
        if Mp != M:
            r = jnp.pad(r, ((0, Mp - M), (0, 0)))
        args.append(r)
    out = _build_fused_matmul(Mp, K, N, tm, tk, tn, act,
                              residual is not None, out_dtype)(*args)
    return out if Mp == M else out[:M]


# ------------------------------------------------------------------
# 3x3 conv + BN + act over the whole (zero-padded, flattened) plane.
#   grid = (B,); weights resident; 9 contiguous tap slices -> 9 MXU matmuls
#   with M = H*(W+2).  Columns [W, W+2) of each output row wrap across the
#   padded row boundary and are discarded afterwards.
# ------------------------------------------------------------------
def _conv3_plane_kernel(x_ref, w_ref, s_ref, t_ref, o_ref, *, wf, mfo, cin,
                        act):
    cout = o_ref.shape[-1]
    acc = jnp.zeros((mfo, cout), jnp.float32)
    for kh in range(3):
        for kw in range(3):
            off = kh * wf + kw
            a = x_ref[0, off:off + mfo, :]                     # (mfo, cin)
            ws = (kh * 3 + kw) * cin
            wk = w_ref[ws:ws + cin, :]                         # (cin, cout)
            if cin == 1:
                # 1-channel stem: rank-1 update on the VPU (no K=1 MXU matmul)
                acc = acc + a.astype(jnp.float32) * wk.astype(jnp.float32)
            else:
                acc = acc + jnp.dot(a, wk,
                                    preferred_element_type=jnp.float32)
    y = acc * s_ref[...] + t_ref[...]
    if act == "relu":
        y = jnp.maximum(y, 0.0)
    o_ref[0] = y.astype(o_ref.dtype)


@functools.lru_cache(maxsize=None)
def _build_conv3_plane(B, Lflat, Wf, MFo, Cin, Cout, act):
    kern = functools.partial(_conv3_plane_kernel, wf=Wf, mfo=MFo, cin=Cin,
                             act=act)
    fn = pl.pallas_call(
        kern,
        out_shape=jax.ShapeDtypeStruct((B, MFo, Cout), jnp.bfloat16),
        grid_spec=pltpu.PrefetchScalarGridSpec(
            num_scalar_prefetch=0,
            grid=(B,),
            in_specs=[
                pl.BlockSpec((1, Lflat, Cin), lambda b: (b, 0, 0)),
                pl.BlockSpec((9 * Cin, Cout), lambda b: (0, 0)),
                pl.BlockSpec((1, Cout), lambda b: (0, 0)),
                pl.BlockSpec((1, Cout), lambda b: (0, 0)),
            ],
            out_specs=pl.BlockSpec((1, MFo, Cout), lambda b: (b, 0, 0)),
        ),
        compiler_params=pltpu.CompilerParams(
            dimension_semantics=("parallel",),
            vmem_limit_bytes=_VMEM_LIMIT),
    )
    return jax.jit(fn)


def conv3x3_bn_act(x, w_flat, scale, shift, act="relu"):
    """Stride-1 3x3 conv + BN + act.  w_flat: (9*Cin, Cout), rows = (kh,kw,cin)."""
    B, H, W, Cin = x.shape
    Cout = w_flat.shape[-1]
    Wf = W + 2
    # zero-pad spatially, flatten (H+2, W+2) onto one sublane axis and append
    # one extra zero row so every tap slice stays in bounds.
    xp = jnp.pad(x.astype(jnp.bfloat16), ((0, 0), (1, 1), (1, 1), (0, 0)))
    xf = xp.reshape(B, (H + 2) * Wf, Cin)
    Lflat = _round_up((H + 2) * Wf + Wf, 8)
    xf = jnp.pad(xf, ((0, 0), (0, Lflat - (H + 2) * Wf), (0, 0)))
    MFo = H * Wf
    out = _build_conv3_plane(B, Lflat, Wf, MFo, Cin, Cout, act)(
        xf, w_flat,
        scale.astype(jnp.float32).reshape(1, Cout),
        shift.astype(jnp.float32).reshape(1, Cout))
    # drop the two wrapped (garbage) columns of each row
    return out.reshape(B, H, Wf, Cout)[:, :, :W, :]


# ------------------------------------------------------------------
# ASP pooling: softmax over time (sublanes) + attentive mean/std, lane-dense C
# ------------------------------------------------------------------
def _asp_kernel(x_ref, e_ref, o_ref):
    x = x_ref[0].astype(jnp.float32)               # (Lp, C)  bf16 -> f32
    e = e_ref[0]                                   # (Lp, C)  f32, pad = -1e30
    m = jnp.max(e, axis=0, keepdims=True)
    p = jnp.exp(e - m)
    denom = jnp.sum(p, axis=0, keepdims=True)
    alpha = p / denom
    mean = jnp.sum(alpha * x, axis=0, keepdims=True)
    msq = jnp.sum(alpha * x * x, axis=0, keepdims=True)
    var = msq - mean * mean
    std = jnp.sqrt(jnp.maximum(var, 1e-9))
    o_ref[0, 0:1, :] = mean
    o_ref[0, 1:2, :] = std


@functools.lru_cache(maxsize=None)
def _build_asp(B, Lp, C):
    fn = pl.pallas_call(
        _asp_kernel,
        out_shape=jax.ShapeDtypeStruct((B, 2, C), jnp.float32),
        grid_spec=pltpu.PrefetchScalarGridSpec(
            num_scalar_prefetch=0,
            grid=(B,),
            in_specs=[pl.BlockSpec((1, Lp, C), lambda b: (b, 0, 0)),
                      pl.BlockSpec((1, Lp, C), lambda b: (b, 0, 0))],
            out_specs=pl.BlockSpec((1, 2, C), lambda b: (b, 0, 0)),
        ),
        compiler_params=pltpu.CompilerParams(
            dimension_semantics=("parallel",),
            vmem_limit_bytes=_VMEM_LIMIT),
    )
    return jax.jit(fn)


def asp_stats(x_blc, e_blc):
    """x (bf16), logits (f32): [B, L, C] (C on lanes).  Softmax over L."""
    B, L, C = x_blc.shape
    Lp = _round_up(L, 8)
    xp = jnp.pad(x_blc.astype(jnp.bfloat16), ((0, 0), (0, Lp - L), (0, 0)))
    # NOTE: -1e30 pad must stay f32 (not representable in bf16).
    ep = jnp.pad(e_blc.astype(jnp.float32), ((0, 0), (0, Lp - L), (0, 0)),
                 constant_values=-1e30)
    out = _build_asp(B, Lp, C)(xp, ep)
    return out[:, 0, :], out[:, 1, :]


# ------------------------------------------------------------------
# Bottleneck block
# ------------------------------------------------------------------
def bottleneck(x, p):
    B, H, W, Cin = x.shape
    stride = p["stride"]
    out = fused_matmul(x.reshape(B * H * W, Cin), p["w1"],
                       p["bn1"][0], p["bn1"][1], act="relu")
    out = out.reshape(B, H, W, -1)
    out = conv3x3_bn_act(out, p["w2"], p["bn2"][0], p["bn2"][1], act="relu")
    if stride != 1:
        # stride-2 conv == stride-1 conv sampled at even output positions
        out = out[:, ::stride, ::stride, :]
    Bo, Ho, Wo, Cmid = out.shape
    if p["downsample"] is not None:
        xs = x if stride == 1 else x[:, ::stride, ::stride, :]
        res = fused_matmul(xs.reshape(Bo * Ho * Wo, Cin), p["downsample"]["w"],
                           p["downsample"]["bn"][0], p["downsample"]["bn"][1],
                           act="none")
    else:
        res = x.reshape(Bo * Ho * Wo, Cin)
    y = fused_matmul(out.reshape(Bo * Ho * Wo, Cmid), p["w3"],
                     p["bn3"][0], p["bn3"][1], residual=res, act="relu")
    return y.reshape(Bo, Ho, Wo, -1)


# ------------------------------------------------------------------
# Parameter construction (deterministic, synthetic); channels padded to 128.
# ------------------------------------------------------------------
def init_params(key, input_size, layers=(3, 4, 6, 3),
                num_filters=(32, 64, 128, 256), embd_dim=192):
    keys = iter(jax.random.split(key, 256))
    expansion = 2
    eps = 1e-5

    def bn_fold(c, cpad):
        # Inference BN with module init (gamma=1, beta=0, mean=0, var=1) folded
        # to scale/shift; identity on padded channels (which carry zeros).
        scale = jnp.ones((c,), jnp.float32) / jnp.sqrt(1.0 + eps)
        shift = jnp.zeros((c,), jnp.float32)
        if cpad > c:
            scale = jnp.concatenate([scale, jnp.ones((cpad - c,), jnp.float32)])
            shift = jnp.concatenate([shift, jnp.zeros((cpad - c,), jnp.float32)])
        return scale, shift

    def conv1x1_w(cin, cout, cinp, coutp):
        w = jax.random.normal(next(keys), (cin, cout), jnp.float32)
        w = w * (2.0 / cout) ** 0.5
        wp = jnp.zeros((cinp, coutp), jnp.float32).at[:cin, :cout].set(w)
        return wp.astype(jnp.bfloat16)

    def conv3x3_w(cin, cout, cinp, coutp):
        fan_out = cout * 9
        w = jax.random.normal(next(keys), (3, 3, cin, cout), jnp.float32)
        w = w * (2.0 / fan_out) ** 0.5
        wp = jnp.zeros((3, 3, cinp, coutp), jnp.float32)
        wp = wp.at[:, :, :cin, :cout].set(w)
        # rows ordered (kh, kw, cin) -> matches the plane kernel's tap slicing
        return wp.reshape(9 * cinp, coutp).astype(jnp.bfloat16)

    p = {}
    p["stem_w"] = conv3x3_w(1, num_filters[0], 1, _cpad(num_filters[0]))
    p["stem_bn"] = bn_fold(num_filters[0], _cpad(num_filters[0]))

    inplanes = num_filters[0]
    strides = (1, 2, 2, 2)
    blocks = []
    for nblocks, planes, stride in zip(layers, num_filters, strides):
        layer_blocks = []
        for bi in range(nblocks):
            s = stride if bi == 0 else 1
            outp = planes * expansion
            blk = {
                "stride": s,
                "w1": conv1x1_w(inplanes, planes, _cpad(inplanes), _cpad(planes)),
                "bn1": bn_fold(planes, _cpad(planes)),
                "w2": conv3x3_w(planes, planes, _cpad(planes), _cpad(planes)),
                "bn2": bn_fold(planes, _cpad(planes)),
                "w3": conv1x1_w(planes, outp, _cpad(planes), _cpad(outp)),
                "bn3": bn_fold(outp, _cpad(outp)),
                "downsample": None,
            }
            if s != 1 or inplanes != outp:
                blk["downsample"] = {
                    "w": conv1x1_w(inplanes, outp, _cpad(inplanes), _cpad(outp)),
                    "bn": bn_fold(outp, _cpad(outp)),
                }
            inplanes = outp
            layer_blocks.append(blk)
        blocks.append(layer_blocks)
    p["blocks"] = blocks

    cat_channels = num_filters[3] * expansion * (input_size // 8)
    att = 128
    p["asp_w1"] = (jax.random.normal(next(keys), (cat_channels, att), jnp.float32)
                   * (1.0 / cat_channels) ** 0.5).astype(jnp.bfloat16)
    p["asp_b1"] = jnp.zeros((att,), jnp.float32)
    p["asp_s1"] = jnp.ones((att,), jnp.float32)
    p["asp_w2"] = (jax.random.normal(next(keys), (att, cat_channels), jnp.float32)
                   * (1.0 / att) ** 0.5).astype(jnp.bfloat16)
    p["asp_b2"] = jnp.zeros((cat_channels,), jnp.float32)
    p["asp_s2"] = jnp.ones((cat_channels,), jnp.float32)

    # Head: BatchNorm1d(2*cat) -> Linear -> BatchNorm1d(embd), folded (exact for
    # inference-mode BN) into one fused matmul; embd padded to 256 lanes.
    embd_pad = _cpad(embd_dim)
    scale2, shift2 = bn_fold(2 * cat_channels, 2 * cat_channels)
    scale3, shift3 = bn_fold(embd_dim, embd_pad)
    w_lin = jax.random.normal(next(keys), (2 * cat_channels, embd_dim),
                              jnp.float32) * (1.0 / (2 * cat_channels)) ** 0.5
    w_lin = jnp.pad(w_lin, ((0, 0), (0, embd_pad - embd_dim)))
    b_lin = jnp.zeros((embd_pad,), jnp.float32)
    w_eff = w_lin * scale2[:, None]
    b_eff = b_lin + shift2 @ w_lin
    p["head_w"] = w_eff.astype(jnp.bfloat16)
    p["head_scale"] = scale3
    p["head_shift"] = scale3 * b_eff + shift3
    p["embd_dim"] = embd_dim
    return p


# ------------------------------------------------------------------
# Full forward
# ------------------------------------------------------------------
def resnet_forward(x, p):
    # x: [B, T, F] (batch, time, feature), same as the PyTorch reference input.
    B, T, F = x.shape
    x = jnp.transpose(x, (0, 2, 1))[..., None]            # NHWC [B, F, T, 1]
    x = x.astype(jnp.bfloat16)

    # stem: 3x3 conv (Cin=1) + BN + ReLU in the plane-conv kernel
    x = conv3x3_bn_act(x, p["stem_w"], p["stem_bn"][0], p["stem_bn"][1],
                       act="relu")

    for layer_blocks in p["blocks"]:
        for blk in layer_blocks:
            x = bottleneck(x, blk)

    # PyTorch: [B, C4, H4, W4].reshape(B, C4*H4, W4); build lane-dense [B, L, C3]
    Bx, H4, W4, C4 = x.shape
    feat = jnp.transpose(x, (0, 2, 3, 1)).reshape(Bx, W4, C4 * H4)
    L, C3 = W4, C4 * H4

    # ASP attention: e = W2 @ tanh(W1 x + b1) + b2, softmax over time.
    xf = feat.reshape(Bx * L, C3)
    h = fused_matmul(xf, p["asp_w1"], p["asp_s1"], p["asp_b1"], act="tanh")
    e = fused_matmul(h, p["asp_w2"], p["asp_s2"], p["asp_b2"], act="none",
                     out_dtype=jnp.float32)
    mean, std = asp_stats(feat, e.reshape(Bx, L, C3))
    pooled = jnp.concatenate([mean, std], axis=1)          # [B, 2*C3]

    # BN1d -> Linear -> BN1d folded into one fused matmul (embd padded to 256).
    y = fused_matmul(pooled, p["head_w"], p["head_scale"], p["head_shift"],
                     act="none", out_dtype=jnp.float32)
    return y[:, :p["embd_dim"]]                            # [B, embd_dim]


if __name__ == "__main__":
    key = jax.random.PRNGKey(0)
    k_param, k_x = jax.random.split(key)

    batch, seq_len, input_size = 2, 16, 16   # small shapes; input_size % 8 == 0
    params = init_params(k_param, input_size)
    x = jax.random.normal(k_x, (batch, seq_len, input_size), jnp.float32)

    out = resnet_forward(x, params)
    out = jax.block_until_ready(out)
    assert out.shape == (batch, 192), out.shape
    assert bool(jnp.all(jnp.isfinite(out)))
    print("KERNEL_OK")
</pallas_src>

<mosaic_0001>
module attributes {stable_mosaic.version = 11 : i64} {
  func.func @_conv3_plane_kernel(%arg0: i32, %arg1: memref<1x344x1xbf16, #tpu.memory_space<vmem>>, %arg2: memref<9x128xbf16, #tpu.memory_space<vmem>>, %arg3: memref<1x128xf32, #tpu.memory_space<vmem>>, %arg4: memref<1x128xf32, #tpu.memory_space<vmem>>, %arg5: memref<1x288x128xbf16, #tpu.memory_space<vmem>>) attributes {dimension_semantics = [#tpu.dimension_semantics<parallel>], iteration_bounds = array<i64: 2>, scalar_prefetch = 0 : i64, scratch_operands = 0 : i64, tpu.core_type = #tpu.core_type<tc>, window_params = [{transform_indices = @transform_0, window_bounds = array<i64: 1, 344, 1>}, {pipeline_mode = #tpu.pipeline_mode<synchronous>, transform_indices = @transform_1, window_bounds = array<i64: 9, 128>}, {pipeline_mode = #tpu.pipeline_mode<synchronous>, transform_indices = @transform_2, window_bounds = array<i64: 1, 128>}, {pipeline_mode = #tpu.pipeline_mode<synchronous>, transform_indices = @transform_3, window_bounds = array<i64: 1, 128>}, {transform_indices = @transform_4, window_bounds = array<i64: 1, 288, 128>}]} {
    %cst = arith.constant 0.000000e+00 : f32
    %0 = vector.broadcast %cst : f32 to vector<288x128xf32>
    %c0 = arith.constant 0 : index
    %c0_0 = arith.constant 0 : index
    %c0_1 = arith.constant 0 : index
    %1 = vector.load %arg1[%c0, %c0_0, %c0_1] : memref<1x344x1xbf16, #tpu.memory_space<vmem>>, vector<1x288x1xbf16>
    %2 = vector.shape_cast %1 : vector<1x288x1xbf16> to vector<288x1xbf16>
    %c0_2 = arith.constant 0 : index
    %c0_3 = arith.constant 0 : index
    %3 = vector.load %arg2[%c0_2, %c0_3] : memref<9x128xbf16, #tpu.memory_space<vmem>>, vector<1x128xbf16>
    %4 = arith.extf %2 : vector<288x1xbf16> to vector<288x1xf32>
    %5 = arith.extf %3 : vector<1x128xbf16> to vector<1x128xf32>
    %6 = vector.broadcast %4 : vector<288x1xf32> to vector<288x128xf32>
    %7 = vector.broadcast %5 : vector<1x128xf32> to vector<288x128xf32>
    %8 = arith.mulf %6, %7 : vector<288x128xf32>
    %9 = arith.addf %0, %8 : vector<288x128xf32>
    %c0_4 = arith.constant 0 : index
    %c1 = arith.constant 1 : index
    %c0_5 = arith.constant 0 : index
    %10 = vector.load %arg1[%c0_4, %c1, %c0_5] : memref<1x344x1xbf16, #tpu.memory_space<vmem>>, vector<1x288x1xbf16>
    %11 = vector.shape_cast %10 : vector<1x288x1xbf16> to vector<288x1xbf16>
    %c1_6 = arith.constant 1 : index
    %c0_7 = arith.constant 0 : index
    %12 = vector.load %arg2[%c1_6, %c0_7] : memref<9x128xbf16, #tpu.memory_space<vmem>>, vector<1x128xbf16>
    %13 = arith.extf %11 : vector<288x1xbf16> to vector<288x1xf32>
    %14 = arith.extf %12 : vector<1x128xbf16> to vector<1x128xf32>
    %15 = vector.broadcast %13 : vector<288x1xf32> to vector<288x128xf32>
    %16 = vector.broadcast %14 : vector<1x128xf32> to vector<288x128xf32>
    %17 = arith.mulf %15, %16 : vector<288x128xf32>
    %18 = arith.addf %9, %17 : vector<288x128xf32>
    %c0_8 = arith.constant 0 : index
    %c2 = arith.constant 2 : index
    %c0_9 = arith.constant 0 : index
    %19 = vector.load %arg1[%c0_8, %c2, %c0_9] : memref<1x344x1xbf16, #tpu.memory_space<vmem>>, vector<1x288x1xbf16>
    %20 = vector.shape_cast %19 : vector<1x288x1xbf16> to vector<288x1xbf16>
    %c2_10 = arith.constant 2 : index
    %c0_11 = arith.constant 0 : index
    %21 = vector.load %arg2[%c2_10, %c0_11] : memref<9x128xbf16, #tpu.memory_space<vmem>>, vector<1x128xbf16>
    %22 = arith.extf %20 : vector<288x1xbf16> to vector<288x1xf32>
    %23 = arith.extf %21 : vector<1x128xbf16> to vector<1x128xf32>
    %24 = vector.broadcast %22 : vector<288x1xf32> to vector<288x128xf32>
    %25 = vector.broadcast %23 : vector<1x128xf32> to vector<288x128xf32>
    %26 = arith.mulf %24, %25 : vector<288x128xf32>
    %27 = arith.addf %18, %26 : vector<288x128xf32>
    %c0_12 = arith.constant 0 : index
    %c18 = arith.constant 18 : index
    %c0_13 = arith.constant 0 : index
    %28 = vector.load %arg1[%c0_12, %c18, %c0_13] : memref<1x344x1xbf16, #tpu.memory_space<vmem>>, vector<1x288x1xbf16>
    %29 = vector.shape_cast %28 : vector<1x288x1xbf16> to vector<288x1xbf16>
    %c3 = arith.constant 3 : index
    %c0_14 = arith.constant 0 : index
    %30 = vector.load %arg2[%c3, %c0_14] : memref<9x128xbf16, #tpu.memory_space<vmem>>, vector<1x128xbf16>
    %31 = arith.extf %29 : vector<288x1xbf16> to vector<288x1xf32>
    %32 = arith.extf %30 : vector<1x128xbf16> to vector<1x128xf32>
    %33 = vector.broadcast %31 : vector<288x1xf32> to vector<288x128xf32>
    %34 = vector.broadcast %32 : vector<1x128xf32> to vector<288x128xf32>
    %35 = arith.mulf %33, %34 : vector<288x128xf32>
    %36 = arith.addf %27, %35 : vector<288x128xf32>
    %c0_15 = arith.constant 0 : index
    %c19 = arith.constant 19 : index
    %c0_16 = arith.constant 0 : index
    %37 = vector.load %arg1[%c0_15, %c19, %c0_16] : memref<1x344x1xbf16, #tpu.memory_space<vmem>>, vector<1x288x1xbf16>
    %38 = vector.shape_cast %37 : vector<1x288x1xbf16> to vector<288x1xbf16>
    %c4 = arith.constant 4 : index
    %c0_17 = arith.constant 0 : index
    %39 = vector.load %arg2[%c4, %c0_17] : memref<9x128xbf16, #tpu.memory_space<vmem>>, vector<1x128xbf16>
    %40 = arith.extf %38 : vector<288x1xbf16> to vector<288x1xf32>
    %41 = arith.extf %39 : vector<1x128xbf16> to vector<1x128xf32>
    %42 = vector.broadcast %40 : vector<288x1xf32> to vector<288x128xf32>
    %43 = vector.broadcast %41 : vector<1x128xf32> to vector<288x128xf32>
    %44 = arith.mulf %42, %43 : vector<288x128xf32>
    %45 = arith.addf %36, %44 : vector<288x128xf32>
    %c0_18 = arith.constant 0 : index
    %c20 = arith.constant 20 : index
    %c0_19 = arith.constant 0 : index
    %46 = vector.load %arg1[%c0_18, %c20, %c0_19] : memref<1x344x1xbf16, #tpu.memory_space<vmem>>, vector<1x288x1xbf16>
    %47 = vector.shape_cast %46 : vector<1x288x1xbf16> to vector<288x1xbf16>
    %c5 = arith.constant 5 : index
    %c0_20 = arith.constant 0 : index
    %48 = vector.load %arg2[%c5, %c0_20] : memref<9x128xbf16, #tpu.memory_space<vmem>>, vector<1x128xbf16>
    %49 = arith.extf %47 : vector<288x1xbf16> to vector<288x1xf32>
    %50 = arith.extf %48 : vector<1x128xbf16> to vector<1x128xf32>
    %51 = vector.broadcast %49 : vector<288x1xf32> to vector<288x128xf32>
    %52 = vector.broadcast %50 : vector<1x128xf32> to vector<288x128xf32>
    %53 = arith.mulf %51, %52 : vector<288x128xf32>
    %54 = arith.addf %45, %53 : vector<288x128xf32>
    %c0_21 = arith.constant 0 : index
    %c36 = arith.constant 36 : index
    %c0_22 = arith.constant 0 : index
    %55 = vector.load %arg1[%c0_21, %c36, %c0_22] : memref<1x344x1xbf16, #tpu.memory_space<vmem>>, vector<1x288x1xbf16>
    %56 = vector.shape_cast %55 : vector<1x288x1xbf16> to vector<288x1xbf16>
    %c6 = arith.constant 6 : index
    %c0_23 = arith.constant 0 : index
    %57 = vector.load %arg2[%c6, %c0_23] : memref<9x128xbf16, #tpu.memory_space<vmem>>, vector<1x128xbf16>
    %58 = arith.extf %56 : vector<288x1xbf16> to vector<288x1xf32>
    %59 = arith.extf %57 : vector<1x128xbf16> to vector<1x128xf32>
    %60 = vector.broadcast %58 : vector<288x1xf32> to vector<288x128xf32>
    %61 = vector.broadcast %59 : vector<1x128xf32> to vector<288x128xf32>
    %62 = arith.mulf %60, %61 : vector<288x128xf32>
    %63 = arith.addf %54, %62 : vector<288x128xf32>
    %c0_24 = arith.constant 0 : index
    %c37 = arith.constant 37 : index
    %c0_25 = arith.constant 0 : index
    %64 = vector.load %arg1[%c0_24, %c37, %c0_25] : memref<1x344x1xbf16, #tpu.memory_space<vmem>>, vector<1x288x1xbf16>
    %65 = vector.shape_cast %64 : vector<1x288x1xbf16> to vector<288x1xbf16>
    %c7 = arith.constant 7 : index
    %c0_26 = arith.constant 0 : index
    %66 = vector.load %arg2[%c7, %c0_26] : memref<9x128xbf16, #tpu.memory_space<vmem>>, vector<1x128xbf16>
    %67 = arith.extf %65 : vector<288x1xbf16> to vector<288x1xf32>
    %68 = arith.extf %66 : vector<1x128xbf16> to vector<1x128xf32>
    %69 = vector.broadcast %67 : vector<288x1xf32> to vector<288x128xf32>
    %70 = vector.broadcast %68 : vector<1x128xf32> to vector<288x128xf32>
    %71 = arith.mulf %69, %70 : vector<288x128xf32>
    %72 = arith.addf %63, %71 : vector<288x128xf32>
    %c0_27 = arith.constant 0 : index
    %c38 = arith.constant 38 : index
    %c0_28 = arith.constant 0 : index
    %73 = vector.load %arg1[%c0_27, %c38, %c0_28] : memref<1x344x1xbf16, #tpu.memory_space<vmem>>, vector<1x288x1xbf16>
    %74 = vector.shape_cast %73 : vector<1x288x1xbf16> to vector<288x1xbf16>
    %c8 = arith.constant 8 : index
    %c0_29 = arith.constant 0 : index
    %75 = vector.load %arg2[%c8, %c0_29] : memref<9x128xbf16, #tpu.memory_space<vmem>>, vector<1x128xbf16>
    %76 = arith.extf %74 : vector<288x1xbf16> to vector<288x1xf32>
    %77 = arith.extf %75 : vector<1x128xbf16> to vector<1x128xf32>
    %78 = vector.broadcast %76 : vector<288x1xf32> to vector<288x128xf32>
    %79 = vector.broadcast %77 : vector<1x128xf32> to vector<288x128xf32>
    %80 = arith.mulf %78, %79 : vector<288x128xf32>
    %81 = arith.addf %72, %80 : vector<288x128xf32>
    %c0_30 = arith.constant 0 : index
    %c0_31 = arith.constant 0 : index
    %82 = vector.load %arg3[%c0_30, %c0_31] : memref<1x128xf32, #tpu.memory_space<vmem>>, vector<1x128xf32>
    %83 = vector.broadcast %82 : vector<1x128xf32> to vector<288x128xf32>
    %84 = arith.mulf %81, %83 : vector<288x128xf32>
    %c0_32 = arith.constant 0 : index
    %c0_33 = arith.constant 0 : index
    %85 = vector.load %arg4[%c0_32, %c0_33] : memref<1x128xf32, #tpu.memory_space<vmem>>, vector<1x128xf32>
    %86 = vector.broadcast %85 : vector<1x128xf32> to vector<288x128xf32>
    %87 = arith.addf %84, %86 : vector<288x128xf32>
    %cst_34 = arith.constant 0.000000e+00 : f32
    %88 = vector.broadcast %cst_34 : f32 to vector<288x128xf32>
    %89 = arith.maximumf %87, %88 : vector<288x128xf32>
    %90 = arith.truncf %89 : vector<288x128xf32> to vector<288x128xbf16>
    %c0_35 = arith.constant 0 : index
    %c0_36 = arith.constant 0 : index
    %c0_37 = arith.constant 0 : index
    %91 = vector.load %arg5[%c0_35, %c0_36, %c0_37] : memref<1x288x128xbf16, #tpu.memory_space<vmem>>, vector<1x288x128xbf16>
    %92 = vector.shape_cast %91 : vector<1x288x128xbf16> to vector<288x128xbf16>
    %93 = vector.shape_cast %90 : vector<288x128xbf16> to vector<1x288x128xbf16>
    tpu.vector_store %arg5[%c0_35, %c0_36, %c0_37], %93 {strides = array<i32>} : memref<1x288x128xbf16, #tpu.memory_space<vmem>>, vector<1x288x128xbf16>,
    return
  }
  func.func @transform_0(%arg0: i32) -> (i32, i32, i32) {
    %c0_i32 = arith.constant 0 : i32
    %c0_i32_0 = arith.constant 0 : i32
    %c0_i32_1 = arith.constant 0 : i32
    return %arg0, %c0_i32, %c0_i32_0 : i32, i32, i32
  }
  func.func @transform_1(%arg0: i32) -> (i32, i32) {
    %c0_i32 = arith.constant 0 : i32
    %c0_i32_0 = arith.constant 0 : i32
    %c0_i32_1 = arith.constant 0 : i32
    return %c0_i32, %c0_i32_0 : i32, i32
  }
  func.func @transform_2(%arg0: i32) -> (i32, i32) {
    %c0_i32 = arith.constant 0 : i32
    %c0_i32_0 = arith.constant 0 : i32
    %c0_i32_1 = arith.constant 0 : i32
    return %c0_i32, %c0_i32_0 : i32, i32
  }
  func.func @transform_3(%arg0: i32) -> (i32, i32) {
    %c0_i32 = arith.constant 0 : i32
    %c0_i32_0 = arith.constant 0 : i32
    %c0_i32_1 = arith.constant 0 : i32
    return %c0_i32, %c0_i32_0 : i32, i32
  }
  func.func @transform_4(%arg0: i32) -> (i32, i32, i32) {
    %c0_i32 = arith.constant 0 : i32
    %c0_i32_0 = arith.constant 0 : i32
    %c0_i32_1 = arith.constant 0 : i32
    return %arg0, %c0_i32, %c0_i32_0 : i32, i32, i32
  }
}

</mosaic_0001>

<llo_original>
// kernel: tpu_custom_call.1
$region0: #{tpu_custom_call.1}
  #allocation0 [shape = 'u32[]', space=smem, size = 0x4, offset = 0x4, fixed_abs, tag = 'smem constant byte address 0x4 - core index']
  #allocation1 [shape = 'u32[72,128]{1,0:T(1,128)}', space=vmem, size = 0x9000, scoped, tag = 'internal scratch']
  %s0 = inlined_call_operand.vmem [shape: bf16[2,344,1], index: 0, kind: input, shape index: {}]
  %s1 = inlined_call_operand.vmem [shape: bf16[9,128], index: 1, kind: input, shape index: {}]
  %s2 = inlined_call_operand.vmem [shape: f32[1,128], index: 2, kind: input, shape index: {}]
  %s3 = inlined_call_operand.vmem [shape: f32[1,128], index: 3, kind: input, shape index: {}]
  %s4 = inlined_call_operand.hbm [shape: bf16[2,288,128], index: 4, kind: output, shape index: {}]
  %s5 = sld [smem:[#allocation0]]
  $region49: #{tpu_custom_call.1} parent=0
    _
  %s7 = ssub.s32 1, %s5
  %s8 = scalar_select 0, %s7, %s5
  $region1: #{tpu_custom_call.1} parent=0
    #allocation2 [shape = 'u8[147456]{0}', space=vmem, size = 0x24000, scoped, tag = 'output window, operand 0']
    #allocation3 [shape = 's32[2]{0}', space=sflag, size = 0x8, scoped, tag = 'scoped memory for tpu_custom_call.1']
    %9 = vsyncpa [#allocation3], 0
    %s10 = scalar_lea.sflag [#allocation3], 1
    %11 = vsyncpa %s10, 0
    loop: start=0, step=1, limit=4
    $region2: #{tpu_custom_call.1} parent=1 // loop_pre_header
      _
    $region3: #{tpu_custom_call.1} parent=1 // loop_header
      %s13 = sphi 0, %s17
      %p14 = scmp.ge.s32.totalorder %s13, 4
      %s23 = sphi 0, %s25
      %s26 = sphi 0, %s23
      %s27 = sphi 0, %s26
      %s43 = sphi 0, %s27
      %s47 = sphi 0, %s47
      %s49 = sphi 0, %s47
      %s50 = sphi 0, %s49
      %s64 = sphi 0, %s50
      %s68 = sphi 0, %s68
      %s70 = sphi 0, %s68
      %s71 = sphi 0, %s70
      %s85 = sphi 0, %s71
      %s89 = sphi 0, %s89
      %s91 = sphi 0, %s89
      %s92 = sphi 0, %s91
      %s106 = sphi 0, %s92
      %s112 = sphi 0, %s114
      %s115 = sphi 0, %s112
      %s116 = sphi 0, %s115
      %s132 = sphi 0, %s116
    $region4: #{tpu_custom_call.1} parent=1 // loop_header_branch
      %16 = sbr.rel (%p14) target = $region8
    $region5: #{tpu_custom_call.1} parent=1 // loop_body
      %s18 = ssub.s32 %s13, 1
      %s19 = ssub.s32 %s13, 2
      %s20 = sadd.s32 %s13, 1
      %s21 = ssub.s32 %s13, %s20
      %p22 = scmp.eq.s32.totalorder %s21, 0
      %s24 = sadd.s32 %s23, 1
      %s25 = scalar_select %p22, %s23, %s24
      %p28 = pneg %p22
      %p29 = scmp.eq.s32.totalorder %s13, 1
      %p30 = por %p28, %p29
      %p31 = scmp.ne.s32.totalorder %s23, %s26
      %p32 = scmp.eq.s32.totalorder %s13, 0
      %p33 = por %p31, %p32
      %p34 = scmp.ne.s32.totalorder %s23, %s26
      %p35 = scmp.eq.s32.totalorder %s18, 1
      %p36 = por %p34, %p35
      %p37 = scmp.ne.s32.totalorder %s26, %s27
      %p38 = scmp.eq.s32.totalorder %s18, 0
      %p39 = por %p37, %p38
      %p40 = scmp.ne.s32.totalorder %s26, %s27
      %p41 = scmp.eq.s32.totalorder %s19, 1
      %p42 = por %p40, %p41
      %p44 = scmp.ne.s32.totalorder %s27, %s43
      %p45 = scmp.eq.s32.totalorder %s19, 0
      %p46 = por %p44, %p45
      %s48 = sadd.s32 %s47, 1
      %p51 = scmp.eq.s32.totalorder %s13, 1
      %p52 = scmp.ne.s32.totalorder %s47, %s49
      %p53 = scmp.eq.s32.totalorder %s13, 0
      %p54 = por %p52, %p53
      %p55 = scmp.ne.s32.totalorder %s47, %s49
      %p56 = scmp.eq.s32.totalorder %s18, 1
      %p57 = por %p55, %p56
      %p58 = scmp.ne.s32.totalorder %s49, %s50
      %p59 = scmp.eq.s32.totalorder %s18, 0
      %p60 = por %p58, %p59
      %p61 = scmp.ne.s32.totalorder %s49, %s50
      %p62 = scmp.eq.s32.totalorder %s19, 1
      %p63 = por %p61, %p62
      %p65 = scmp.ne.s32.totalorder %s50, %s64
      %p66 = scmp.eq.s32.totalorder %s19, 0
      %p67 = por %p65, %p66
      %s69 = sadd.s32 %s68, 1
      %p72 = scmp.eq.s32.totalorder %s13, 1
      %p73 = scmp.ne.s32.totalorder %s68, %s70
      %p74 = scmp.eq.s32.totalorder %s13, 0
      %p75 = por %p73, %p74
      %p76 = scmp.ne.s32.totalorder %s68, %s70
      %p77 = scmp.eq.s32.totalorder %s18, 1
      %p78 = por %p76, %p77
      %p79 = scmp.ne.s32.totalorder %s70, %s71
      %p80 = scmp.eq.s32.totalorder %s18, 0
      %p81 = por %p79, %p80
      %p82 = scmp.ne.s32.totalorder %s70, %s71
      %p83 = scmp.eq.s32.totalorder %s19, 1
      %p84 = por %p82, %p83
      %p86 = scmp.ne.s32.totalorder %s71, %s85
      %p87 = scmp.eq.s32.totalorder %s19, 0
      %p88 = por %p86, %p87
      %s90 = sadd.s32 %s89, 1
      %p93 = scmp.eq.s32.totalorder %s13, 1
      %p94 = scmp.ne.s32.totalorder %s89, %s91
      %p95 = scmp.eq.s32.totalorder %s13, 0
      %p96 = por %p94, %p95
      %p97 = scmp.ne.s32.totalorder %s89, %s91
      %p98 = scmp.eq.s32.totalorder %s18, 1
      %p99 = por %p97, %p98
      %p100 = scmp.ne.s32.totalorder %s91, %s92
      %p101 = scmp.eq.s32.totalorder %s18, 0
      %p102 = por %p100, %p101
      %p103 = scmp.ne.s32.totalorder %s91, %s92
      %p104 = scmp.eq.s32.totalorder %s19, 1
      %p105 = por %p103, %p104
      %p107 = scmp.ne.s32.totalorder %s92, %s106
      %p108 = scmp.eq.s32.totalorder %s19, 0
      %p109 = por %p107, %p108
      %s110 = ssub.s32 %s13, %s20
      %p111 = scmp.eq.s32.totalorder %s110, 0
      %s113 = sadd.s32 %s112, 1
      %s114 = scalar_select %p111, %s112, %s113
      %p117 = pneg %p111
      %p118 = scmp.eq.s32.totalorder %s13, 1
      %p119 = por %p117, %p118
      %p120 = scmp.ne.s32.totalorder %s112, %s115
      %p121 = scmp.eq.s32.totalorder %s13, 0
      %p122 = por %p120, %p121
      %p123 = scmp.ne.s32.totalorder %s112, %s115
      %p124 = scmp.eq.s32.totalorder %s18, 1
      %p125 = por %p123, %p124
      %p126 = scmp.ne.s32.totalorder %s115, %s116
      %p127 = scmp.eq.s32.totalorder %s18, 0
      %p128 = por %p126, %p127
      %p129 = scmp.ne.s32.totalorder %s115, %s116
      %p130 = scmp.eq.s32.totalorder %s19, 1
      %p131 = por %p129, %p130
      %p133 = scmp.ne.s32.totalorder %s116, %s132
      %p134 = scmp.eq.s32.totalorder %s19, 0
      %p135 = por %p133, %p134
      %p136 = scmp.le.s32.totalorder 1, %s13
      %p137 = scmp.lt.s32.totalorder %s13, 3
      %p138 = pnand %p136, %p137
      %p139 = pneg %p138
      // Predicated region
      $region9: #{tpu_custom_call.1} parent=5 // pred_check
        _
      $region10: #{tpu_custom_call.1} parent=5 // pred_check_branch
        %141 = sbr.rel (%p138) target = $region12
      $region11: #{tpu_custom_call.1} parent=5 // pred_region
        %s142 = ssub.s32 %s13, 1
        // Predicated region
        $region13: #{tpu_custom_call.1} parent=11 // pred_check
          %p143 = pneg %p60
        $region14: #{tpu_custom_call.1} parent=11 // pred_check_branch
          %145 = sbr.rel (%p143) target = $region16
        $region15: #{tpu_custom_call.1} parent=11 // pred_region
          _
        $region16: #{tpu_custom_call.1} parent=11 // pred_fallthru
          _
        // Predicated region
        $region17: #{tpu_custom_call.1} parent=11 // pred_check
          %p146 = pneg %p81
        $region18: #{tpu_custom_call.1} parent=11 // pred_check_branch
          %148 = sbr.rel (%p146) target = $region20
        $region19: #{tpu_custom_call.1} parent=11 // pred_region
          _
        $region20: #{tpu_custom_call.1} parent=11 // pred_fallthru
          _
        // Predicated region
        $region21: #{tpu_custom_call.1} parent=11 // pred_check
          %p149 = pneg %p102
        $region22: #{tpu_custom_call.1} parent=11 // pred_check_branch
          %151 = sbr.rel (%p149) target = $region24
        $region23: #{tpu_custom_call.1} parent=11 // pred_region
          _
        $region24: #{tpu_custom_call.1} parent=11 // pred_fallthru
          _
      $region12: #{tpu_custom_call.1} parent=5 // pred_fallthru
        _
      %p152 = scmp.lt.s32.totalorder %s13, 2
      // Predicated region
      $region25: #{tpu_custom_call.1} parent=5 // pred_check
        %p153 = pneg %p152
      $region26: #{tpu_custom_call.1} parent=5 // pred_check_branch
        %155 = sbr.rel (%p153) target = $region28
      $region27: #{tpu_custom_call.1} parent=5 // pred_region
        // Predicated region
        $region29: #{tpu_custom_call.1} parent=27 // pred_check
          %p156 = pneg %p33
        $region30: #{tpu_custom_call.1} parent=27 // pred_check_branch
          %158 = sbr.rel (%p156) target = $region32
        $region31: #{tpu_custom_call.1} parent=27 // pred_region
          %p159 = scmp.lt.s32.totalorder %s13, 1
          %s160 = scalar_select %p159, %s13, 1
          %s161 = smul.addr %s160, 43
          %s162 = smul.addr %s161, 4
          %s163 = scalar_lea.vmem %s0, %s162
        $region32: #{tpu_custom_call.1} parent=27 // pred_fallthru
          _
      $region28: #{tpu_custom_call.1} parent=5 // pred_fallthru
        _
      %p164 = scmp.le.s32.totalorder 1, %s13
      %p165 = scmp.lt.s32.totalorder %s13, 3
      %p166 = pnand %p164, %p165
      %p167 = pneg %p166
      // Predicated region
      $region33: #{tpu_custom_call.1} parent=5 // pred_check
        _
      $region34: #{tpu_custom_call.1} parent=5 // pred_check_branch
        %169 = sbr.rel (%p166) target = $region36
      $region35: #{tpu_custom_call.1} parent=5 // pred_region
        %s170 = ssub.s32 %s13, 1
        %p171 = scmp.lt.s32.totalorder %s18, 1
        %s172 = scalar_select %p171, %s18, 1
        %s173 = smul.addr %s172, 43
        %s174 = smul.addr %s173, 4
        %s175 = scalar_lea.vmem %s0, %s174
        %p176 = pneg %p39
        %p177 = pneg %p36
        %p178 = pneg %p60
        %p179 = pneg %p57
        %p180 = pneg %p81
        %p181 = pneg %p78
        %p182 = pneg %p102
        %p183 = pneg %p99
        %p184 = pneg %p128
        %p185 = pneg %p125
        %s186 = sand.u32 %s115, 1
        %s187 = scalar_lea.sflag [#allocation3], %s186
        %s188 = sand.u32 %s115, 1
        %s189 = smul.addr %s188, 144
        %s190 = scalar_lea.vmem [#allocation2], %s189
        %p191 = scmp.lt.s32.totalorder %s18, 1
        %s192 = scalar_select %p191, %s18, 1
        %s193 = smul.addr %s192, 43
        %s194 = smul.addr %s193, 4
        %s195 = scalar_lea.vmem %s0, %s194
        %v196 = vld [vmem:[%s195] sm:$0xf]
        %v197 = vld [vmem:[%s195 + $0x4] sm:$0xf]
        %v198 = vld [vmem:[%s195 + $0x8] sm:$0xf]
        %v199 = vld [vmem:[%s195 + $0xc] sm:$0xf]
        %v200 = vld [vmem:[%s195 + $0x10] sm:$0xf]
        %v201 = vld [vmem:[%s195 + $0x14] sm:$0xf]
        %v202 = vld [vmem:[%s195 + $0x18] sm:$0xf]
        %v203 = vld [vmem:[%s195 + $0x1c] sm:$0xf]
        %v204 = vld [vmem:[%s195 + $0x20] sm:$0xf]
        %v205 = vld [vmem:[%s195 + $0x24] sm:$0xf]
        %v206 = vld [vmem:[%s195 + $0x28] sm:$0xf]
        %v207 = vld [vmem:[%s195 + $0x2c] sm:$0xf]
        %v208 = vld [vmem:[%s195 + $0x30] sm:$0xf]
        %v209 = vld [vmem:[%s195 + $0x34] sm:$0xf]
        %v210 = vld [vmem:[%s195 + $0x38] sm:$0xf]
        %v211 = vld [vmem:[%s195 + $0x3c] sm:$0xf]
        %v212 = vld [vmem:[%s195 + $0x40] sm:$0xf]
        %v213 = vld [vmem:[%s195 + $0x44] sm:$0xf]
        %v214 = vld [vmem:[%s195 + $0x48] sm:$0xf]
        %v215 = vld [vmem:[%s195 + $0x4c] sm:$0xf]
        %v216 = vld [vmem:[%s195 + $0x50] sm:$0xf]
        %v217 = vld [vmem:[%s195 + $0x54] sm:$0xf]
        %v218 = vld [vmem:[%s195 + $0x58] sm:$0xf]
        %v219 = vld [vmem:[%s195 + $0x5c] sm:$0xf]
        %v220 = vld [vmem:[%s195 + $0x60] sm:$0xf]
        %v221 = vld [vmem:[%s195 + $0x64] sm:$0xf]
        %v222 = vld [vmem:[%s195 + $0x68] sm:$0xf]
        %v223 = vld [vmem:[%s195 + $0x6c] sm:$0xf]
        %v224 = vld [vmem:[%s195 + $0x70] sm:$0xf]
        %v225 = vld [vmem:[%s195 + $0x74] sm:$0xf]
        %v226 = vld [vmem:[%s195 + $0x78] sm:$0xf]
        %v227 = vld [vmem:[%s195 + $0x7c] sm:$0xf]
        %v228 = vld [vmem:[%s195 + $0x80] sm:$0xf]
        %v229 = vld [vmem:[%s195 + $0x84] sm:$0xf]
        %v230 = vld [vmem:[%s195 + $0x88] sm:$0xf]
        %v231 = vld [vmem:[%s195 + $0x8c] sm:$0xf]
        %v232 = vld [vmem:[%s1] sm:$0x1]
        %v233 = vunpack.c.l.bf16 %v196
        %v234 = vunpack.c.l.bf16 %v197
        %v235 = vunpack.c.l.bf16 %v198
        %v236 = vunpack.c.l.bf16 %v199
        %v237 = vunpack.c.l.bf16 %v200
        %v238 = vunpack.c.l.bf16 %v201
        %v239 = vunpack.c.l.bf16 %v202
        %v240 = vunpack.c.l.bf16 %v203
        %v241 = vunpack.c.l.bf16 %v204
        %v242 = vunpack.c.l.bf16 %v205
        %v243 = vunpack.c.l.bf16 %v206
        %v244 = vunpack.c.l.bf16 %v207
        %v245 = vunpack.c.l.bf16 %v208
        %v246 = vunpack.c.l.bf16 %v209
        %v247 = vunpack.c.l.bf16 %v210
        %v248 = vunpack.c.l.bf16 %v211
        %v249 = vunpack.c.l.bf16 %v212
        %v250 = vunpack.c.l.bf16 %v213
        %v251 = vunpack.c.l.bf16 %v214
        %v252 = vunpack.c.l.bf16 %v215
        %v253 = vunpack.c.l.bf16 %v216
        %v254 = vunpack.c.l.bf16 %v217
        %v255 = vunpack.c.l.bf16 %v218
        %v256 = vunpack.c.l.bf16 %v219
        %v257 = vunpack.c.l.bf16 %v220
        %v258 = vunpack.c.l.bf16 %v221
        %v259 = vunpack.c.l.bf16 %v222
        %v260 = vunpack.c.l.bf16 %v223
        %v261 = vunpack.c.l.bf16 %v224
        %v262 = vunpack.c.l.bf16 %v225
        %v263 = vunpack.c.l.bf16 %v226
        %v264 = vunpack.c.l.bf16 %v227
        %v265 = vunpack.c.l.bf16 %v228
        %v266 = vunpack.c.l.bf16 %v229
        %v267 = vunpack.c.l.bf16 %v230
        %v268 = vunpack.c.l.bf16 %v231
        %v269 = vunpack.c.l.bf16 %v232
        %271 = vset.pattern.permute.xlu0 0
        %272 = vperm.xlu0 %271, %v233
        %v273 = vpop.permute.xlu0 %272
        %276 = vset.pattern.permute.xlu0 0
        %277 = vperm.xlu0 %276, %v234
        %v278 = vpop.permute.xlu0 %277
        %281 = vset.pattern.permute.xlu0 0
        %282 = vperm.xlu0 %281, %v235
        %v283 = vpop.permute.xlu0 %282
        %286 = vset.pattern.permute.xlu0 0
        %287 = vperm.xlu0 %286, %v236
        %v288 = vpop.permute.xlu0 %287
        %291 = vset.pattern.permute.xlu0 0
        %292 = vperm.xlu0 %291, %v237
        %v293 = vpop.permute.xlu0 %292
        %296 = vset.pattern.permute.xlu0 0
        %297 = vperm.xlu0 %296, %v238
        %v298 = vpop.permute.xlu0 %297
        %301 = vset.pattern.permute.xlu0 0
        %302 = vperm.xlu0 %301, %v239
        %v303 = vpop.permute.xlu0 %302
        %306 = vset.pattern.permute.xlu0 0
        %307 = vperm.xlu0 %306, %v240
        %v308 = vpop.permute.xlu0 %307
        %311 = vset.pattern.permute.xlu0 0
        %312 = vperm.xlu0 %311, %v241
        %v313 = vpop.permute.xlu0 %312
        %316 = vset.pattern.permute.xlu0 0
        %317 = vperm.xlu0 %316, %v242
        %v318 = vpop.permute.xlu0 %317
        %321 = vset.pattern.permute.xlu0 0
        %322 = vperm.xlu0 %321, %v243
        %v323 = vpop.permute.xlu0 %322
        %326 = vset.pattern.permute.xlu0 0
        %327 = vperm.xlu0 %326, %v244
        %v328 = vpop.permute.xlu0 %327
        %331 = vset.pattern.permute.xlu0 0
        %332 = vperm.xlu0 %331, %v245
        %v333 = vpop.permute.xlu0 %332
        %336 = vset.pattern.permute.xlu0 0
        %337 = vperm.xlu0 %336, %v246
        %v338 = vpop.permute.xlu0 %337
        %341 = vset.pattern.permute.xlu0 0
        %342 = vperm.xlu0 %341, %v247
        %v343 = vpop.permute.xlu0 %342
        %346 = vset.pattern.permute.xlu0 0
        %347 = vperm.xlu0 %346, %v248
        %v348 = vpop.permute.xlu0 %347
        %351 = vset.pattern.permute.xlu0 0
        %352 = vperm.xlu0 %351, %v249
        %v353 = vpop.permute.xlu0 %352
        %356 = vset.pattern.permute.xlu0 0
        %357 = vperm.xlu0 %356, %v250
        %v358 = vpop.permute.xlu0 %357
        %361 = vset.pattern.permute.xlu0 0
        %362 = vperm.xlu0 %361, %v251
        %v363 = vpop.permute.xlu0 %362
        %366 = vset.pattern.permute.xlu0 0
        %367 = vperm.xlu0 %366, %v252
        %v368 = vpop.permute.xlu0 %367
        %371 = vset.pattern.permute.xlu0 0
        %372 = vperm.xlu0 %371, %v253
        %v373 = vpop.permute.xlu0 %372
        %376 = vset.pattern.permute.xlu0 0
        %377 = vperm.xlu0 %376, %v254
        %v378 = vpop.permute.xlu0 %377
        %381 = vset.pattern.permute.xlu0 0
        %382 = vperm.xlu0 %381, %v255
        %v383 = vpop.permute.xlu0 %382
        %386 = vset.pattern.permute.xlu0 0
        %387 = vperm.xlu0 %386, %v256
        %v388 = vpop.permute.xlu0 %387
        %391 = vset.pattern.permute.xlu0 0
        %392 = vperm.xlu0 %391, %v257
        %v393 = vpop.permute.xlu0 %392
        %396 = vset.pattern.permute.xlu0 0
        %397 = vperm.xlu0 %396, %v258
        %v398 = vpop.permute.xlu0 %397
        %401 = vset.pattern.permute.xlu0 0
        %402 = vperm.xlu0 %401, %v259
        %v403 = vpop.permute.xlu0 %402
        %406 = vset.pattern.permute.xlu0 0
        %407 = vperm.xlu0 %406, %v260
        %v408 = vpop.permute.xlu0 %407
        %411 = vset.pattern.permute.xlu0 0
        %412 = vperm.xlu0 %411, %v261
        %v413 = vpop.permute.xlu0 %412
        %416 = vset.pattern.permute.xlu0 0
        %417 = vperm.xlu0 %416, %v262
        %v418 = vpop.permute.xlu0 %417
        %421 = vset.pattern.permute.xlu0 0
        %422 = vperm.xlu0 %421, %v263
        %v423 = vpop.permute.xlu0 %422
        %426 = vset.pattern.permute.xlu0 0
        %427 = vperm.xlu0 %426, %v264
        %v428 = vpop.permute.xlu0 %427
        %431 = vset.pattern.permute.xlu0 0
        %432 = vperm.xlu0 %431, %v265
        %v433 = vpop.permute.xlu0 %432
        %436 = vset.pattern.permute.xlu0 0
        %437 = vperm.xlu0 %436, %v266
        %v438 = vpop.permute.xlu0 %437
        %441 = vset.pattern.permute.xlu0 0
        %442 = vperm.xlu0 %441, %v267
        %v443 = vpop.permute.xlu0 %442
        %446 = vset.pattern.permute.xlu0 0
        %447 = vperm.xlu0 %446, %v268
        %v448 = vpop.permute.xlu0 %447
        %v450 = vperm.slane %v269, 0
        %v451 = vmul.f32 %v273, %v450
        %v452 = vmul.f32 %v278, %v450
        %v453 = vmul.f32 %v283, %v450
        %v454 = vmul.f32 %v288, %v450
        %v455 = vmul.f32 %v293, %v450
        %v456 = vmul.f32 %v298, %v450
        %v457 = vmul.f32 %v303, %v450
        %v458 = vmul.f32 %v308, %v450
        %v459 = vmul.f32 %v313, %v450
        %v460 = vmul.f32 %v318, %v450
        %v461 = vmul.f32 %v323, %v450
        %v462 = vmul.f32 %v328, %v450
        %v463 = vmul.f32 %v333, %v450
        %v464 = vmul.f32 %v338, %v450
        %v465 = vmul.f32 %v343, %v450
        %v466 = vmul.f32 %v348, %v450
        %v467 = vmul.f32 %v353, %v450
        %v468 = vmul.f32 %v358, %v450
        %v469 = vmul.f32 %v363, %v450
        %v470 = vmul.f32 %v368, %v450
        %v471 = vmul.f32 %v373, %v450
        %v472 = vmul.f32 %v378, %v450
        %v473 = vmul.f32 %v383, %v450
        %v474 = vmul.f32 %v388, %v450
        %v475 = vmul.f32 %v393, %v450
        %v476 = vmul.f32 %v398, %v450
        %v477 = vmul.f32 %v403, %v450
        %v478 = vmul.f32 %v408, %v450
        %v479 = vmul.f32 %v413, %v450
        %v480 = vmul.f32 %v418, %v450
        %v481 = vmul.f32 %v423, %v450
        %v482 = vmul.f32 %v428, %v450
        %v483 = vmul.f32 %v433, %v450
        %v484 = vmul.f32 %v438, %v450
        %v485 = vmul.f32 %v443, %v450
        %v486 = vmul.f32 %v448, %v450
        %v487 = vadd.f32 %v451, 0.0
        %v488 = vadd.f32 %v452, 0.0
        %v489 = vadd.f32 %v453, 0.0
        %v490 = vadd.f32 %v454, 0.0
        %v491 = vadd.f32 %v455, 0.0
        %v492 = vadd.f32 %v456, 0.0
        %v493 = vadd.f32 %v457, 0.0
        %v494 = vadd.f32 %v458, 0.0
        %v495 = vadd.f32 %v459, 0.0
        %v496 = vadd.f32 %v460, 0.0
        %v497 = vadd.f32 %v461, 0.0
        %v498 = vadd.f32 %v462, 0.0
        %v499 = vadd.f32 %v463, 0.0
        %v500 = vadd.f32 %v464, 0.0
        %v501 = vadd.f32 %v465, 0.0
        %v502 = vadd.f32 %v466, 0.0
        %v503 = vadd.f32 %v467, 0.0
        %v504 = vadd.f32 %v468, 0.0
        %v505 = vadd.f32 %v469, 0.0
        %v506 = vadd.f32 %v470, 0.0
        %v507 = vadd.f32 %v471, 0.0
        %v508 = vadd.f32 %v472, 0.0
        %v509 = vadd.f32 %v473, 0.0
        %v510 = vadd.f32 %v474, 0.0
        %v511 = vadd.f32 %v475, 0.0
        %v512 = vadd.f32 %v476, 0.0
        %v513 = vadd.f32 %v477, 0.0
        %v514 = vadd.f32 %v478, 0.0
        %v515 = vadd.f32 %v479, 0.0
        %v516 = vadd.f32 %v480, 0.0
        %v517 = vadd.f32 %v481, 0.0
        %v518 = vadd.f32 %v482, 0.0
        %v519 = vadd.f32 %v483, 0.0
        %v520 = vadd.f32 %v484, 0.0
        %v521 = vadd.f32 %v485, 0.0
        %v522 = vadd.f32 %v486, 0.0
        %v523 = vld [vmem:[%s195] sm:$0xf]
        %v524 = vld [vmem:[%s195 + $0x4] sm:$0xf]
        %v525 = vld [vmem:[%s195 + $0x8] sm:$0xf]
        %v526 = vld [vmem:[%s195 + $0xc] sm:$0xf]
        %v527 = vld [vmem:[%s195 + $0x10] sm:$0xf]
        %v528 = vld [vmem:[%s195 + $0x14] sm:$0xf]
        %v529 = vld [vmem:[%s195 + $0x18] sm:$0xf]
        %v530 = vld [vmem:[%s195 + $0x1c] sm:$0xf]
        %v531 = vld [vmem:[%s195 + $0x20] sm:$0xf]
        %v532 = vld [vmem:[%s195 + $0x24] sm:$0xf]
        %v533 = vld [vmem:[%s195 + $0x28] sm:$0xf]
        %v534 = vld [vmem:[%s195 + $0x2c] sm:$0xf]
        %v535 = vld [vmem:[%s195 + $0x30] sm:$0xf]
        %v536 = vld [vmem:[%s195 + $0x34] sm:$0xf]
        %v537 = vld [vmem:[%s195 + $0x38] sm:$0xf]
        %v538 = vld [vmem:[%s195 + $0x3c] sm:$0xf]
        %v539 = vld [vmem:[%s195 + $0x40] sm:$0xf]
        %v540 = vld [vmem:[%s195 + $0x44] sm:$0xf]
        %v541 = vld [vmem:[%s195 + $0x48] sm:$0xf]
        %v542 = vld [vmem:[%s195 + $0x4c] sm:$0xf]
        %v543 = vld [vmem:[%s195 + $0x50] sm:$0xf]
        %v544 = vld [vmem:[%s195 + $0x54] sm:$0xf]
        %v545 = vld [vmem:[%s195 + $0x58] sm:$0xf]
        %v546 = vld [vmem:[%s195 + $0x5c] sm:$0xf]
        %v547 = vld [vmem:[%s195 + $0x60] sm:$0xf]
        %v548 = vld [vmem:[%s195 + $0x64] sm:$0xf]
        %v549 = vld [vmem:[%s195 + $0x68] sm:$0xf]
        %v550 = vld [vmem:[%s195 + $0x6c] sm:$0xf]
        %v551 = vld [vmem:[%s195 + $0x70] sm:$0xf]
        %v552 = vld [vmem:[%s195 + $0x74] sm:$0xf]
        %v553 = vld [vmem:[%s195 + $0x78] sm:$0xf]
        %v554 = vld [vmem:[%s195 + $0x7c] sm:$0xf]
        %v555 = vld [vmem:[%s195 + $0x80] sm:$0xf]
        %v556 = vld [vmem:[%s195 + $0x84] sm:$0xf]
        %v557 = vld [vmem:[%s195 + $0x88] sm:$0xf]
        %v558 = vld [vmem:[%s195 + $0x8c] sm:$0xf]
        %v559 = vld [vmem:[%s195 + $0x90] sm:$0x1]
        %v560 = vunpack.c.l.bf16 %v523
        %v561 = vunpack.c.l.bf16 %v524
        %v562 = vunpack.c.l.bf16 %v525
        %v563 = vunpack.c.l.bf16 %v526
        %v564 = vunpack.c.l.bf16 %v527
        %v565 = vunpack.c.l.bf16 %v528
        %v566 = vunpack.c.l.bf16 %v529
        %v567 = vunpack.c.l.bf16 %v530
        %v568 = vunpack.c.l.bf16 %v531
        %v569 = vunpack.c.l.bf16 %v532
        %v570 = vunpack.c.l.bf16 %v533
        %v571 = vunpack.c.l.bf16 %v534
        %v572 = vunpack.c.l.bf16 %v535
        %v573 = vunpack.c.l.bf16 %v536
        %v574 = vunpack.c.l.bf16 %v537
        %v575 = vunpack.c.l.bf16 %v538
        %v576 = vunpack.c.l.bf16 %v539
        %v577 = vunpack.c.l.bf16 %v540
        %v578 = vunpack.c.l.bf16 %v541
        %v579 = vunpack.c.l.bf16 %v542
        %v580 = vunpack.c.l.bf16 %v543
        %v581 = vunpack.c.l.bf16 %v544
        %v582 = vunpack.c.l.bf16 %v545
        %v583 = vunpack.c.l.bf16 %v546
        %v584 = vunpack.c.l.bf16 %v547
        %v585 = vunpack.c.l.bf16 %v548
        %v586 = vunpack.c.l.bf16 %v549
        %v587 = vunpack.c.l.bf16 %v550
        %v588 = vunpack.c.l.bf16 %v551
        %v589 = vunpack.c.l.bf16 %v552
        %v590 = vunpack.c.l.bf16 %v553
        %v591 = vunpack.c.l.bf16 %v554
        %v592 = vunpack.c.l.bf16 %v555
        %v593 = vunpack.c.l.bf16 %v556
        %v594 = vunpack.c.l.bf16 %v557
        %v595 = vunpack.c.l.bf16 %v558
        %v596 = vunpack.c.l.bf16 %v559
        %598 = vset.pattern.permute.xlu0 0
        %599 = vperm.xlu0 %598, %v560
        %v600 = vpop.permute.xlu0 %599
        %603 = vset.pattern.permute.xlu0 0
        %604 = vperm.xlu0 %603, %v561
        %v605 = vpop.permute.xlu0 %604
        %608 = vset.pattern.permute.xlu0 0
        %609 = vperm.xlu0 %608, %v562
        %v610 = vpop.permute.xlu0 %609
        %613 = vset.pattern.permute.xlu0 0
        %614 = vperm.xlu0 %613, %v563
        %v615 = vpop.permute.xlu0 %614
        %618 = vset.pattern.permute.xlu0 0
        %619 = vperm.xlu0 %618, %v564
        %v620 = vpop.permute.xlu0 %619
        %623 = vset.pattern.permute.xlu0 0
        %624 = vperm.xlu0 %623, %v565
        %v625 = vpop.permute.xlu0 %624
        %628 = vset.pattern.permute.xlu0 0
        %629 = vperm.xlu0 %628, %v566
        %v630 = vpop.permute.xlu0 %629
        %633 = vset.pattern.permute.xlu0 0
        %634 = vperm.xlu0 %633, %v567
        %v635 = vpop.permute.xlu0 %634
        %638 = vset.pattern.permute.xlu0 0
        %639 = vperm.xlu0 %638, %v568
        %v640 = vpop.permute.xlu0 %639
        %643 = vset.pattern.permute.xlu0 0
        %644 = vperm.xlu0 %643, %v569
        %v645 = vpop.permute.xlu0 %644
        %648 = vset.pattern.permute.xlu0 0
        %649 = vperm.xlu0 %648, %v570
        %v650 = vpop.permute.xlu0 %649
        %653 = vset.pattern.permute.xlu0 0
        %654 = vperm.xlu0 %653, %v571
        %v655 = vpop.permute.xlu0 %654
        %658 = vset.pattern.permute.xlu0 0
        %659 = vperm.xlu0 %658, %v572
        %v660 = vpop.permute.xlu0 %659
        %663 = vset.pattern.permute.xlu0 0
        %664 = vperm.xlu0 %663, %v573
        %v665 = vpop.permute.xlu0 %664
        %668 = vset.pattern.permute.xlu0 0
        %669 = vperm.xlu0 %668, %v574
        %v670 = vpop.permute.xlu0 %669
        %673 = vset.pattern.permute.xlu0 0
        %674 = vperm.xlu0 %673, %v575
        %v675 = vpop.permute.xlu0 %674
        %678 = vset.pattern.permute.xlu0 0
        %679 = vperm.xlu0 %678, %v576
        %v680 = vpop.permute.xlu0 %679
        %683 = vset.pattern.permute.xlu0 0
        %684 = vperm.xlu0 %683, %v577
        %v685 = vpop.permute.xlu0 %684
        %688 = vset.pattern.permute.xlu0 0
        %689 = vperm.xlu0 %688, %v578
        %v690 = vpop.permute.xlu0 %689
        %693 = vset.pattern.permute.xlu0 0
        %694 = vperm.xlu0 %693, %v579
        %v695 = vpop.permute.xlu0 %694
        %698 = vset.pattern.permute.xlu0 0
        %699 = vperm.xlu0 %698, %v580
        %v700 = vpop.permute.xlu0 %699
        %703 = vset.pattern.permute.xlu0 0
        %704 = vperm.xlu0 %703, %v581
        %v705 = vpop.permute.xlu0 %704
        %708 = vset.pattern.permute.xlu0 0
        %709 = vperm.xlu0 %708, %v582
        %v710 = vpop.permute.xlu0 %709
        %713 = vset.pattern.permute.xlu0 0
        %714 = vperm.xlu0 %713, %v583
        %v715 = vpop.permute.xlu0 %714
        %718 = vset.pattern.permute.xlu0 0
        %719 = vperm.xlu0 %718, %v584
        %v720 = vpop.permute.xlu0 %719
        %723 = vset.pattern.permute.xlu0 0
        %724 = vperm.xlu0 %723, %v585
        %v725 = vpop.permute.xlu0 %724
        %728 = vset.pattern.permute.xlu0 0
        %729 = vperm.xlu0 %728, %v586
        %v730 = vpop.permute.xlu0 %729
        %733 = vset.pattern.permute.xlu0 0
        %734 = vperm.xlu0 %733, %v587
        %v735 = vpop.permute.xlu0 %734
        %738 = vset.pattern.permute.xlu0 0
        %739 = vperm.xlu0 %738, %v588
        %v740 = vpop.permute.xlu0 %739
        %743 = vset.pattern.permute.xlu0 0
        %744 = vperm.xlu0 %743, %v589
        %v745 = vpop.permute.xlu0 %744
        %748 = vset.pattern.permute.xlu0 0
        %749 = vperm.xlu0 %748, %v590
        %v750 = vpop.permute.xlu0 %749
        %753 = vset.pattern.permute.xlu0 0
        %754 = vperm.xlu0 %753, %v591
        %v755 = vpop.permute.xlu0 %754
        %758 = vset.pattern.permute.xlu0 0
        %759 = vperm.xlu0 %758, %v592
        %v760 = vpop.permute.xlu0 %759
        %763 = vset.pattern.permute.xlu0 0
        %764 = vperm.xlu0 %763, %v593
        %v765 = vpop.permute.xlu0 %764
        %768 = vset.pattern.permute.xlu0 0
        %769 = vperm.xlu0 %768, %v594
        %v770 = vpop.permute.xlu0 %769
        %773 = vset.pattern.permute.xlu0 0
        %774 = vperm.xlu0 %773, %v595
        %v775 = vpop.permute.xlu0 %774
        %778 = vset.pattern.permute.xlu0 0
        %779 = vperm.xlu0 %778, %v596
        %v780 = vpop.permute.xlu0 %779
        %v782 = vperm.slane %v269, 1
        %v783 = vmul.f32 %v600, %v782
        %v784 = vmul.f32 %v605, %v782
        %v785 = vmul.f32 %v610, %v782
        %v786 = vmul.f32 %v615, %v782
        %v787 = vmul.f32 %v620, %v782
        %v788 = vmul.f32 %v625, %v782
        %v789 = vmul.f32 %v630, %v782
        %v790 = vmul.f32 %v635, %v782
        %v791 = vmul.f32 %v640, %v782
        %v792 = vmul.f32 %v645, %v782
        %v793 = vmul.f32 %v650, %v782
        %v794 = vmul.f32 %v655, %v782
        %v795 = vmul.f32 %v660, %v782
        %v796 = vmul.f32 %v665, %v782
        %v797 = vmul.f32 %v670, %v782
        %v798 = vmul.f32 %v675, %v782
        %v799 = vmul.f32 %v680, %v782
        %v800 = vmul.f32 %v685, %v782
        %v801 = vmul.f32 %v690, %v782
        %v802 = vmul.f32 %v695, %v782
        %v803 = vmul.f32 %v700, %v782
        %v804 = vmul.f32 %v705, %v782
        %v805 = vmul.f32 %v710, %v782
        %v806 = vmul.f32 %v715, %v782
        %v807 = vmul.f32 %v720, %v782
        %v808 = vmul.f32 %v725, %v782
        %v809 = vmul.f32 %v730, %v782
        %v810 = vmul.f32 %v735, %v782
        %v811 = vmul.f32 %v740, %v782
        %v812 = vmul.f32 %v745, %v782
        %v813 = vmul.f32 %v750, %v782
        %v814 = vmul.f32 %v755, %v782
        %v815 = vmul.f32 %v760, %v782
        %v816 = vmul.f32 %v765, %v782
        %v817 = vmul.f32 %v770, %v782
        %v818 = vmul.f32 %v775, %v782
        %v819 = vmul.f32 %v780, %v782
        %vm857 = vcmask 1046528
        %v858 = vrot.slane %v783, 1
        %v859 = vrot.slane %v784, 1
        %v860 = vsel %vm857, %v858, %v859
        %v861 = vrot.slane %v785, 1
        %v862 = vsel %vm857, %v859, %v861
        %v863 = vrot.slane %v786, 1
        %v864 = vsel %vm857, %v861, %v863
        %v865 = vrot.slane %v787, 1
        %v866 = vsel %vm857, %v863, %v865
        %v867 = vrot.slane %v788, 1
        %v868 = vsel %vm857, %v865, %v867
        %v869 = vrot.slane %v789, 1
        %v870 = vsel %vm857, %v867, %v869
        %v871 = vrot.slane %v790, 1
        %v872 = vsel %vm857, %v869, %v871
        %v873 = vrot.slane %v791, 1
        %v874 = vsel %vm857, %v871, %v873
        %v875 = vrot.slane %v792, 1
        %v876 = vsel %vm857, %v873, %v875
        %v877 = vrot.slane %v793, 1
        %v878 = vsel %vm857, %v875, %v877
        %v879 = vrot.slane %v794, 1
        %v880 = vsel %vm857, %v877, %v879
        %v881 = vrot.slane %v795, 1
        %v882 = vsel %vm857, %v879, %v881
        %v883 = vrot.slane %v796, 1
        %v884 = vsel %vm857, %v881, %v883
        %v885 = vrot.slane %v797, 1
        %v886 = vsel %vm857, %v883, %v885
        %v887 = vrot.slane %v798, 1
        %v888 = vsel %vm857, %v885, %v887
        %v889 = vrot.slane %v799, 1
        %v890 = vsel %vm857, %v887, %v889
        %v891 = vrot.slane %v800, 1
        %v892 = vsel %vm857, %v889, %v891
        %v893 = vrot.slane %v801, 1
        %v894 = vsel %vm857, %v891, %v893
        %v895 = vrot.slane %v802, 1
        %v896 = vsel %vm857, %v893, %v895
        %v897 = vrot.slane %v803, 1
        %v898 = vsel %vm857, %v895, %v897
        %v899 = vrot.slane %v804, 1
        %v900 = vsel %vm857, %v897, %v899
        %v901 = vrot.slane %v805, 1
        %v902 = vsel %vm857, %v899, %v901
        %v903 = vrot.slane %v806, 1
        %v904 = vsel %vm857, %v901, %v903
        %v905 = vrot.slane %v807, 1
        %v906 = vsel %vm857, %v903, %v905
        %v907 = vrot.slane %v808, 1
        %v908 = vsel %vm857, %v905, %v907
        %v909 = vrot.slane %v809, 1
        %v910 = vsel %vm857, %v907, %v909
        %v911 = vrot.slane %v810, 1
        %v912 = vsel %vm857, %v909, %v911
        %v913 = vrot.slane %v811, 1
        %v914 = vsel %vm857, %v911, %v913
        %v915 = vrot.slane %v812, 1
        %v916 = vsel %vm857, %v913, %v915
        %v917 = vrot.slane %v813, 1
        %v918 = vsel %vm857, %v915, %v917
        %v919 = vrot.slane %v814, 1
        %v920 = vsel %vm857, %v917, %v919
        %v921 = vrot.slane %v815, 1
        %v922 = vsel %vm857, %v919, %v921
        %v923 = vrot.slane %v816, 1
        %v924 = vsel %vm857, %v921, %v923
        %v925 = vrot.slane %v817, 1
        %v926 = vsel %vm857, %v923, %v925
        %v927 = vrot.slane %v818, 1
        %v928 = vsel %vm857, %v925, %v927
        %v929 = vrot.slane %v819, 1
        %v930 = vsel %vm857, %v927, %v929
        %v967 = vadd.f32 %v487, %v860
        %v968 = vadd.f32 %v488, %v862
        %v969 = vadd.f32 %v489, %v864
        %v970 = vadd.f32 %v490, %v866
        %v971 = vadd.f32 %v491, %v868
        %v972 = vadd.f32 %v492, %v870
        %v973 = vadd.f32 %v493, %v872
        %v974 = vadd.f32 %v494, %v874
        %v975 = vadd.f32 %v495, %v876
        %v976 = vadd.f32 %v496, %v878
        %v977 = vadd.f32 %v497, %v880
        %v978 = vadd.f32 %v498, %v882
        %v979 = vadd.f32 %v499, %v884
        %v980 = vadd.f32 %v500, %v886
        %v981 = vadd.f32 %v501, %v888
        %v982 = vadd.f32 %v502, %v890
        %v983 = vadd.f32 %v503, %v892
        %v984 = vadd.f32 %v504, %v894
        %v985 = vadd.f32 %v505, %v896
        %v986 = vadd.f32 %v506, %v898
        %v987 = vadd.f32 %v507, %v900
        %v988 = vadd.f32 %v508, %v902
        %v989 = vadd.f32 %v509, %v904
        %v990 = vadd.f32 %v510, %v906
        %v991 = vadd.f32 %v511, %v908
        %v992 = vadd.f32 %v512, %v910
        %v993 = vadd.f32 %v513, %v912
        %v994 = vadd.f32 %v514, %v914
        %v995 = vadd.f32 %v515, %v916
        %v996 = vadd.f32 %v516, %v918
        %v997 = vadd.f32 %v517, %v920
        %v998 = vadd.f32 %v518, %v922
        %v999 = vadd.f32 %v519, %v924
        %v1000 = vadd.f32 %v520, %v926
        %v1001 = vadd.f32 %v521, %v928
        %v1002 = vadd.f32 %v522, %v930
        %v1003 = vld [vmem:[%s195] sm:$0xe]
        %v1004 = vld [vmem:[%s1] sm:$0x2]
        %v1005 = vunpack.c.l.bf16 %v1003
        %v1006 = vunpack.c.l.bf16 %v1004
        %1008 = vset.pattern.permute.xlu0 0
        %1009 = vperm.xlu0 %1008, %v1005
        %v1010 = vpop.permute.xlu0 %1009
        %v1012 = vperm.slane %v1006, 2
        %v1013 = vmul.f32 %v1010, %v1012
        %v1014 = vmul.f32 %v605, %v1012
        %v1015 = vmul.f32 %v610, %v1012
        %v1016 = vmul.f32 %v615, %v1012
        %v1017 = vmul.f32 %v620, %v1012
        %v1018 = vmul.f32 %v625, %v1012
        %v1019 = vmul.f32 %v630, %v1012
        %v1020 = vmul.f32 %v635, %v1012
        %v1021 = vmul.f32 %v640, %v1012
        %v1022 = vmul.f32 %v645, %v1012
        %v1023 = vmul.f32 %v650, %v1012
        %v1024 = vmul.f32 %v655, %v1012
        %v1025 = vmul.f32 %v660, %v1012
        %v1026 = vmul.f32 %v665, %v1012
        %v1027 = vmul.f32 %v670, %v1012
        %v1028 = vmul.f32 %v675, %v1012
        %v1029 = vmul.f32 %v680, %v1012
        %v1030 = vmul.f32 %v685, %v1012
        %v1031 = vmul.f32 %v690, %v1012
        %v1032 = vmul.f32 %v695, %v1012
        %v1033 = vmul.f32 %v700, %v1012
        %v1034 = vmul.f32 %v705, %v1012
        %v1035 = vmul.f32 %v710, %v1012
        %v1036 = vmul.f32 %v715, %v1012
        %v1037 = vmul.f32 %v720, %v1012
        %v1038 = vmul.f32 %v725, %v1012
        %v1039 = vmul.f32 %v730, %v1012
        %v1040 = vmul.f32 %v735, %v1012
        %v1041 = vmul.f32 %v740, %v1012
        %v1042 = vmul.f32 %v745, %v1012
        %v1043 = vmul.f32 %v750, %v1012
        %v1044 = vmul.f32 %v755, %v1012
        %v1045 = vmul.f32 %v760, %v1012
        %v1046 = vmul.f32 %v765, %v1012
        %v1047 = vmul.f32 %v770, %v1012
        %v1048 = vmul.f32 %v775, %v1012
        %v1049 = vmul.f32 %v780, %v1012
        %vm1087 = vcmask 1045504
        %v1088 = vrot.slane %v1013, 2
        %v1089 = vrot.slane %v1014, 2
        %v1090 = vsel %vm1087, %v1088, %v1089
        %v1091 = vrot.slane %v1015, 2
        %v1092 = vsel %vm1087, %v1089, %v1091
        %v1093 = vrot.slane %v1016, 2
        %v1094 = vsel %vm1087, %v1091, %v1093
        %v1095 = vrot.slane %v1017, 2
        %v1096 = vsel %vm1087, %v1093, %v1095
        %v1097 = vrot.slane %v1018, 2
        %v1098 = vsel %vm1087, %v1095, %v1097
        %v1099 = vrot.slane %v1019, 2
        %v1100 = vsel %vm1087, %v1097, %v1099
        %v1101 = vrot.slane %v1020, 2
        %v1102 = vsel %vm1087, %v1099, %v1101
        %v1103 = vrot.slane %v1021, 2
        %v1104 = vsel %vm1087, %v1101, %v1103
        %v1105 = vrot.slane %v1022, 2
        %v1106 = vsel %vm1087, %v1103, %v1105
        %v1107 = vrot.slane %v1023, 2
        %v1108 = vsel %vm1087, %v1105, %v1107
        %v1109 = vrot.slane %v1024, 2
        %v1110 = vsel %vm1087, %v1107, %v1109
        %v1111 = vrot.slane %v1025, 2
        %v1112 = vsel %vm1087, %v1109, %v1111
        %v1113 = vrot.slane %v1026, 2
        %v1114 = vsel %vm1087, %v1111, %v1113
        %v1115 = vrot.slane %v1027, 2
        %v1116 = vsel %vm1087, %v1113, %v1115
        %v1117 = vrot.slane %v1028, 2
        %v1118 = vsel %vm1087, %v1115, %v1117
        %v1119 = vrot.slane %v1029, 2
        %v1120 = vsel %vm1087, %v1117, %v1119
        %v1121 = vrot.slane %v1030, 2
        %v1122 = vsel %vm1087, %v1119, %v1121
        %v1123 = vrot.slane %v1031, 2
        %v1124 = vsel %vm1087, %v1121, %v1123
        %v1125 = vrot.slane %v1032, 2
        %v1126 = vsel %vm1087, %v1123, %v1125
        %v1127 = vrot.slane %v1033, 2
        %v1128 = vsel %vm1087, %v1125, %v1127
        %v1129 = vrot.slane %v1034, 2
        %v1130 = vsel %vm1087, %v1127, %v1129
        %v1131 = vrot.slane %v1035, 2
        %v1132 = vsel %vm1087, %v1129, %v1131
        %v1133 = vrot.slane %v1036, 2
        %v1134 = vsel %vm1087, %v1131, %v1133
        %v1135 = vrot.slane %v1037, 2
        %v1136 = vsel %vm1087, %v1133, %v1135
        %v1137 = vrot.slane %v1038, 2
        %v1138 = vsel %vm1087, %v1135, %v1137
        %v1139 = vrot.slane %v1039, 2
        %v1140 = vsel %vm1087, %v1137, %v1139
        %v1141 = vrot.slane %v1040, 2
        %v1142 = vsel %vm1087, %v1139, %v1141
        %v1143 = vrot.slane %v1041, 2
        %v1144 = vsel %vm1087, %v1141, %v1143
        %v1145 = vrot.slane %v1042, 2
        %v1146 = vsel %vm1087, %v1143, %v1145
        %v1147 = vrot.slane %v1043, 2
        %v1148 = vsel %vm1087, %v1145, %v1147
        %v1149 = vrot.slane %v1044, 2
        %v1150 = vsel %vm1087, %v1147, %v1149
        %v1151 = vrot.slane %v1045, 2
        %v1152 = vsel %vm1087, %v1149, %v1151
        %v1153 = vrot.slane %v1046, 2
        %v1154 = vsel %vm1087, %v1151, %v1153
        %v1155 = vrot.slane %v1047, 2
        %v1156 = vsel %vm1087, %v1153, %v1155
        %v1157 = vrot.slane %v1048, 2
        %v1158 = vsel %vm1087, %v1155, %v1157
        %v1159 = vrot.slane %v1049, 2
        %v1160 = vsel %vm1087, %v1157, %v1159
        %v1197 = vadd.f32 %v967, %v1090
        %v1198 = vadd.f32 %v968, %v1092
        %v1199 = vadd.f32 %v969, %v1094
        %v1200 = vadd.f32 %v970, %v1096
        %v1201 = vadd.f32 %v971, %v1098
        %v1202 = vadd.f32 %v972, %v1100
        %v1203 = vadd.f32 %v973, %v1102
        %v1204 = vadd.f32 %v974, %v1104
        %v1205 = vadd.f32 %v975, %v1106
        %v1206 = vadd.f32 %v976, %v1108
        %v1207 = vadd.f32 %v977, %v1110
        %v1208 = vadd.f32 %v978, %v1112
        %v1209 = vadd.f32 %v979, %v1114
        %v1210 = vadd.f32 %v980, %v1116
        %v1211 = vadd.f32 %v981, %v1118
        %v1212 = vadd.f32 %v982, %v1120
        %v1213 = vadd.f32 %v983, %v1122
        %v1214 = vadd.f32 %v984, %v1124
        %v1215 = vadd.f32 %v985, %v1126
        %v1216 = vadd.f32 %v986, %v1128
        %v1217 = vadd.f32 %v987, %v1130
        %v1218 = vadd.f32 %v988, %v1132
        %v1219 = vadd.f32 %v989, %v1134
        %v1220 = vadd.f32 %v990, %v1136
        %v1221 = vadd.f32 %v991, %v1138
        %v1222 = vadd.f32 %v992, %v1140
        %v1223 = vadd.f32 %v993, %v1142
        %v1224 = vadd.f32 %v994, %v1144
        %v1225 = vadd.f32 %v995, %v1146
        %v1226 = vadd.f32 %v996, %v1148
        %v1227 = vadd.f32 %v997, %v1150
        %v1228 = vadd.f32 %v998, %v1152
        %v1229 = vadd.f32 %v999, %v1154
        %v1230 = vadd.f32 %v1000, %v1156
        %v1231 = vadd.f32 %v1001, %v1158
        %v1232 = vadd.f32 %v1002, %v1160
        %v1233 = vld [vmem:[%s195 + $0x8] sm:$0xe]
        %v1234 = vld [vmem:[%s195 + $0xc] sm:$0xf]
        %v1235 = vld [vmem:[%s195 + $0x10] sm:$0xf]
        %v1236 = vld [vmem:[%s195 + $0x14] sm:$0xf]
        %v1237 = vld [vmem:[%s195 + $0x18] sm:$0xf]
        %v1238 = vld [vmem:[%s195 + $0x1c] sm:$0xf]
        %v1239 = vld [vmem:[%s195 + $0x20] sm:$0xf]
        %v1240 = vld [vmem:[%s195 + $0x24] sm:$0xf]
        %v1241 = vld [vmem:[%s195 + $0x28] sm:$0xf]
        %v1242 = vld [vmem:[%s195 + $0x2c] sm:$0xf]
        %v1243 = vld [vmem:[%s195 + $0x30] sm:$0xf]
        %v1244 = vld [vmem:[%s195 + $0x34] sm:$0xf]
        %v1245 = vld [vmem:[%s195 + $0x38] sm:$0xf]
        %v1246 = vld [vmem:[%s195 + $0x3c] sm:$0xf]
        %v1247 = vld [vmem:[%s195 + $0x40] sm:$0xf]
        %v1248 = vld [vmem:[%s195 + $0x44] sm:$0xf]
        %v1249 = vld [vmem:[%s195 + $0x48] sm:$0xf]
        %v1250 = vld [vmem:[%s195 + $0x4c] sm:$0xf]
        %v1251 = vld [vmem:[%s195 + $0x50] sm:$0xf]
        %v1252 = vld [vmem:[%s195 + $0x54] sm:$0xf]
        %v1253 = vld [vmem:[%s195 + $0x58] sm:$0xf]
        %v1254 = vld [vmem:[%s195 + $0x5c] sm:$0xf]
        %v1255 = vld [vmem:[%s195 + $0x60] sm:$0xf]
        %v1256 = vld [vmem:[%s195 + $0x64] sm:$0xf]
        %v1257 = vld [vmem:[%s195 + $0x68] sm:$0xf]
        %v1258 = vld [vmem:[%s195 + $0x6c] sm:$0xf]
        %v1259 = vld [vmem:[%s195 + $0x70] sm:$0xf]
        %v1260 = vld [vmem:[%s195 + $0x74] sm:$0xf]
        %v1261 = vld [vmem:[%s195 + $0x78] sm:$0xf]
        %v1262 = vld [vmem:[%s195 + $0x7c] sm:$0xf]
        %v1263 = vld [vmem:[%s195 + $0x80] sm:$0xf]
        %v1264 = vld [vmem:[%s195 + $0x84] sm:$0xf]
        %v1265 = vld [vmem:[%s195 + $0x88] sm:$0xf]
        %v1266 = vld [vmem:[%s195 + $0x8c] sm:$0xf]
        %v1267 = vld [vmem:[%s195 + $0x90] sm:$0xf]
        %v1268 = vld [vmem:[%s195 + $0x94] sm:$0xf]
        %v1269 = vld [vmem:[%s195 + $0x98] sm:$0x1]
        %v1270 = vunpack.c.l.bf16 %v1233
        %v1271 = vunpack.c.l.bf16 %v1234
        %v1272 = vunpack.c.l.bf16 %v1235
        %v1273 = vunpack.c.l.bf16 %v1236
        %v1274 = vunpack.c.l.bf16 %v1237
        %v1275 = vunpack.c.l.bf16 %v1238
        %v1276 = vunpack.c.l.bf16 %v1239
        %v1277 = vunpack.c.l.bf16 %v1240
        %v1278 = vunpack.c.l.bf16 %v1241
        %v1279 = vunpack.c.l.bf16 %v1242
        %v1280 = vunpack.c.l.bf16 %v1243
        %v1281 = vunpack.c.l.bf16 %v1244
        %v1282 = vunpack.c.l.bf16 %v1245
        %v1283 = vunpack.c.l.bf16 %v1246
        %v1284 = vunpack.c.l.bf16 %v1247
        %v1285 = vunpack.c.l.bf16 %v1248
        %v1286 = vunpack.c.l.bf16 %v1249
        %v1287 = vunpack.c.l.bf16 %v1250
        %v1288 = vunpack.c.l.bf16 %v1251
        %v1289 = vunpack.c.l.bf16 %v1252
        %v1290 = vunpack.c.l.bf16 %v1253
        %v1291 = vunpack.c.l.bf16 %v1254
        %v1292 = vunpack.c.l.bf16 %v1255
        %v1293 = vunpack.c.l.bf16 %v1256
        %v1294 = vunpack.c.l.bf16 %v1257
        %v1295 = vunpack.c.l.bf16 %v1258
        %v1296 = vunpack.c.l.bf16 %v1259
        %v1297 = vunpack.c.l.bf16 %v1260
        %v1298 = vunpack.c.l.bf16 %v1261
        %v1299 = vunpack.c.l.bf16 %v1262
        %v1300 = vunpack.c.l.bf16 %v1263
        %v1301 = vunpack.c.l.bf16 %v1264
        %v1302 = vunpack.c.l.bf16 %v1265
        %v1303 = vunpack.c.l.bf16 %v1266
        %v1304 = vunpack.c.l.bf16 %v1267
        %v1305 = vunpack.c.l.bf16 %v1268
        %v1306 = vunpack.c.l.bf16 %v1269
        %1308 = vset.pattern.permute.xlu0 0
        %1309 = vperm.xlu0 %1308, %v1270
        %v1310 = vpop.permute.xlu0 %1309
        %1313 = vset.pattern.permute.xlu0 0
        %1314 = vperm.xlu0 %1313, %v1271
        %v1315 = vpop.permute.xlu0 %1314
        %1318 = vset.pattern.permute.xlu0 0
        %1319 = vperm.xlu0 %1318, %v1272
        %v1320 = vpop.permute.xlu0 %1319
        %1323 = vset.pattern.permute.xlu0 0
        %1324 = vperm.xlu0 %1323, %v1273
        %v1325 = vpop.permute.xlu0 %1324
        %1328 = vset.pattern.permute.xlu0 0
        %1329 = vperm.xlu0 %1328, %v1274
        %v1330 = vpop.permute.xlu0 %1329
        %1333 = vset.pattern.permute.xlu0 0
        %1334 = vperm.xlu0 %1333, %v1275
        %v1335 = vpop.permute.xlu0 %1334
        %1338 = vset.pattern.permute.xlu0 0
        %1339 = vperm.xlu0 %1338, %v1276
        %v1340 = vpop.permute.xlu0 %1339
        %1343 = vset.pattern.permute.xlu0 0
        %1344 = vperm.xlu0 %1343, %v1277
        %v1345 = vpop.permute.xlu0 %1344
        %1348 = vset.pattern.permute.xlu0 0
        %1349 = vperm.xlu0 %1348, %v1278
        %v1350 = vpop.permute.xlu0 %1349
        %1353 = vset.pattern.permute.xlu0 0
        %1354 = vperm.xlu0 %1353, %v1279
        %v1355 = vpop.permute.xlu0 %1354
        %1358 = vset.pattern.permute.xlu0 0
        %1359 = vperm.xlu0 %1358, %v1280
        %v1360 = vpop.permute.xlu0 %1359
        %1363 = vset.pattern.permute.xlu0 0
        %1364 = vperm.xlu0 %1363, %v1281
        %v1365 = vpop.permute.xlu0 %1364
        %1368 = vset.pattern.permute.xlu0 0
        %1369 = vperm.xlu0 %1368, %v1282
        %v1370 = vpop.permute.xlu0 %1369
        %1373 = vset.pattern.permute.xlu0 0
        %1374 = vperm.xlu0 %1373, %v1283
        %v1375 = vpop.permute.xlu0 %1374
        %1378 = vset.pattern.permute.xlu0 0
        %1379 = vperm.xlu0 %1378, %v1284
        %v1380 = vpop.permute.xlu0 %1379
        %1383 = vset.pattern.permute.xlu0 0
        %1384 = vperm.xlu0 %1383, %v1285
        %v1385 = vpop.permute.xlu0 %1384
        %1388 = vset.pattern.permute.xlu0 0
        %1389 = vperm.xlu0 %1388, %v1286
        %v1390 = vpop.permute.xlu0 %1389
        %1393 = vset.pattern.permute.xlu0 0
        %1394 = vperm.xlu0 %1393, %v1287
        %v1395 = vpop.permute.xlu0 %1394
        %1398 = vset.pattern.permute.xlu0 0
        %1399 = vperm.xlu0 %1398, %v1288
        %v1400 = vpop.permute.xlu0 %1399
        %1403 = vset.pattern.permute.xlu0 0
        %1404 = vperm.xlu0 %1403, %v1289
        %v1405 = vpop.permute.xlu0 %1404
        %1408 = vset.pattern.permute.xlu0 0
        %1409 = vperm.xlu0 %1408, %v1290
        %v1410 = vpop.permute.xlu0 %1409
        %1413 = vset.pattern.permute.xlu0 0
        %1414 = vperm.xlu0 %1413, %v1291
        %v1415 = vpop.permute.xlu0 %1414
        %1418 = vset.pattern.permute.xlu0 0
        %1419 = vperm.xlu0 %1418, %v1292
        %v1420 = vpop.permute.xlu0 %1419
        %1423 = vset.pattern.permute.xlu0 0
        %1424 = vperm.xlu0 %1423, %v1293
        %v1425 = vpop.permute.xlu0 %1424
        %1428 = vset.pattern.permute.xlu0 0
        %1429 = vperm.xlu0 %1428, %v1294
        %v1430 = vpop.permute.xlu0 %1429
        %1433 = vset.pattern.permute.xlu0 0
        %1434 = vperm.xlu0 %1433, %v1295
        %v1435 = vpop.permute.xlu0 %1434
        %1438 = vset.pattern.permute.xlu0 0
        %1439 = vperm.xlu0 %1438, %v1296
        %v1440 = vpop.permute.xlu0 %1439
        %1443 = vset.pattern.permute.xlu0 0
        %1444 = vperm.xlu0 %1443, %v1297
        %v1445 = vpop.permute.xlu0 %1444
        %1448 = vset.pattern.permute.xlu0 0
        %1449 = vperm.xlu0 %1448, %v1298
        %v1450 = vpop.permute.xlu0 %1449
        %1453 = vset.pattern.permute.xlu0 0
        %1454 = vperm.xlu0 %1453, %v1299
        %v1455 = vpop.permute.xlu0 %1454
        %1458 = vset.pattern.permute.xlu0 0
        %1459 = vperm.xlu0 %1458, %v1300
        %v1460 = vpop.permute.xlu0 %1459
        %1463 = vset.pattern.permute.xlu0 0
        %1464 = vperm.xlu0 %1463, %v1301
        %v1465 = vpop.permute.xlu0 %1464
        %1468 = vset.pattern.permute.xlu0 0
        %1469 = vperm.xlu0 %1468, %v1302
        %v1470 = vpop.permute.xlu0 %1469
        %1473 = vset.pattern.permute.xlu0 0
        %1474 = vperm.xlu0 %1473, %v1303
        %v1475 = vpop.permute.xlu0 %1474
        %1478 = vset.pattern.permute.xlu0 0
        %1479 = vperm.xlu0 %1478, %v1304
        %v1480 = vpop.permute.xlu0 %1479
        %1483 = vset.pattern.permute.xlu0 0
        %1484 = vperm.xlu0 %1483, %v1305
        %v1485 = vpop.permute.xlu0 %1484
        %1488 = vset.pattern.permute.xlu0 0
        %1489 = vperm.xlu0 %1488, %v1306
        %v1490 = vpop.permute.xlu0 %1489
        %v1492 = vperm.slane %v1006, 3
        %v1493 = vmul.f32 %v1310, %v1492
        %v1494 = vmul.f32 %v1315, %v1492
        %v1495 = vmul.f32 %v1320, %v1492
        %v1496 = vmul.f32 %v1325, %v1492
        %v1497 = vmul.f32 %v1330, %v1492
        %v1498 = vmul.f32 %v1335, %v1492
        %v1499 = vmul.f32 %v1340, %v1492
        %v1500 = vmul.f32 %v1345, %v1492
        %v1501 = vmul.f32 %v1350, %v1492
        %v1502 = vmul.f32 %v1355, %v1492
        %v1503 = vmul.f32 %v1360, %v1492
        %v1504 = vmul.f32 %v1365, %v1492
        %v1505 = vmul.f32 %v1370, %v1492
        %v1506 = vmul.f32 %v1375, %v1492
        %v1507 = vmul.f32 %v1380, %v1492
        %v1508 = vmul.f32 %v1385, %v1492
        %v1509 = vmul.f32 %v1390, %v1492
        %v1510 = vmul.f32 %v1395, %v1492
        %v1511 = vmul.f32 %v1400, %v1492
        %v1512 = vmul.f32 %v1405, %v1492
        %v1513 = vmul.f32 %v1410, %v1492
        %v1514 = vmul.f32 %v1415, %v1492
        %v1515 = vmul.f32 %v1420, %v1492
        %v1516 = vmul.f32 %v1425, %v1492
        %v1517 = vmul.f32 %v1430, %v1492
        %v1518 = vmul.f32 %v1435, %v1492
        %v1519 = vmul.f32 %v1440, %v1492
        %v1520 = vmul.f32 %v1445, %v1492
        %v1521 = vmul.f32 %v1450, %v1492
        %v1522 = vmul.f32 %v1455, %v1492
        %v1523 = vmul.f32 %v1460, %v1492
        %v1524 = vmul.f32 %v1465, %v1492
        %v1525 = vmul.f32 %v1470, %v1492
        %v1526 = vmul.f32 %v1475, %v1492
        %v1527 = vmul.f32 %v1480, %v1492
        %v1528 = vmul.f32 %v1485, %v1492
        %v1529 = vmul.f32 %v1490, %v1492
        %v1567 = vrot.slane %v1493, 2
        %v1568 = vrot.slane %v1494, 2
        %v1569 = vsel %vm1087, %v1567, %v1568
        %v1570 = vrot.slane %v1495, 2
        %v1571 = vsel %vm1087, %v1568, %v1570
        %v1572 = vrot.slane %v1496, 2
        %v1573 = vsel %vm1087, %v1570, %v1572
        %v1574 = vrot.slane %v1497, 2
        %v1575 = vsel %vm1087, %v1572, %v1574
        %v1576 = vrot.slane %v1498, 2
        %v1577 = vsel %vm1087, %v1574, %v1576
        %v1578 = vrot.slane %v1499, 2
        %v1579 = vsel %vm1087, %v1576, %v1578
        %v1580 = vrot.slane %v1500, 2
        %v1581 = vsel %vm1087, %v1578, %v1580
        %v1582 = vrot.slane %v1501, 2
        %v1583 = vsel %vm1087, %v1580, %v1582
        %v1584 = vrot.slane %v1502, 2
        %v1585 = vsel %vm1087, %v1582, %v1584
        %v1586 = vrot.slane %v1503, 2
        %v1587 = vsel %vm1087, %v1584, %v1586
        %v1588 = vrot.slane %v1504, 2
        %v1589 = vsel %vm1087, %v1586, %v1588
        %v1590 = vrot.slane %v1505, 2
        %v1591 = vsel %vm1087, %v1588, %v1590
        %v1592 = vrot.slane %v1506, 2
        %v1593 = vsel %vm1087, %v1590, %v1592
        %v1594 = vrot.slane %v1507, 2
        %v1595 = vsel %vm1087, %v1592, %v1594
        %v1596 = vrot.slane %v1508, 2
        %v1597 = vsel %vm1087, %v1594, %v1596
        %v1598 = vrot.slane %v1509, 2
        %v1599 = vsel %vm1087, %v1596, %v1598
        %v1600 = vrot.slane %v1510, 2
        %v1601 = vsel %vm1087, %v1598, %v1600
        %v1602 = vrot.slane %v1511, 2
        %v1603 = vsel %vm1087, %v1600, %v1602
        %v1604 = vrot.slane %v1512, 2
        %v1605 = vsel %vm1087, %v1602, %v1604
        %v1606 = vrot.slane %v1513, 2
        %v1607 = vsel %vm1087, %v1604, %v1606
        %v1608 = vrot.slane %v1514, 2
        %v1609 = vsel %vm1087, %v1606, %v1608
        %v1610 = vrot.slane %v1515, 2
        %v1611 = vsel %vm1087, %v1608, %v1610
        %v1612 = vrot.slane %v1516, 2
        %v1613 = vsel %vm1087, %v1610, %v1612
        %v1614 = vrot.slane %v1517, 2
        %v1615 = vsel %vm1087, %v1612, %v1614
        %v1616 = vrot.slane %v1518, 2
        %v1617 = vsel %vm1087, %v1614, %v1616
        %v1618 = vrot.slane %v1519, 2
        %v1619 = vsel %vm1087, %v1616, %v1618
        %v1620 = vrot.slane %v1520, 2
        %v1621 = vsel %vm1087, %v1618, %v1620
        %v1622 = vrot.slane %v1521, 2
        %v1623 = vsel %vm1087, %v1620, %v1622
        %v1624 = vrot.slane %v1522, 2
        %v1625 = vsel %vm1087, %v1622, %v1624
        %v1626 = vrot.slane %v1523, 2
        %v1627 = vsel %vm1087, %v1624, %v1626
        %v1628 = vrot.slane %v1524, 2
        %v1629 = vsel %vm1087, %v1626, %v1628
        %v1630 = vrot.slane %v1525, 2
        %v1631 = vsel %vm1087, %v1628, %v1630
        %v1632 = vrot.slane %v1526, 2
        %v1633 = vsel %vm1087, %v1630, %v1632
        %v1634 = vrot.slane %v1527, 2
        %v1635 = vsel %vm1087, %v1632, %v1634
        %v1636 = vrot.slane %v1528, 2
        %v1637 = vsel %vm1087, %v1634, %v1636
        %v1638 = vrot.slane %v1529, 2
        %v1639 = vsel %vm1087, %v1636, %v1638
        %v1676 = vadd.f32 %v1197, %v1569
        %v1677 = vadd.f32 %v1198, %v1571
        %v1678 = vadd.f32 %v1199, %v1573
        %v1679 = vadd.f32 %v1200, %v1575
        %v1680 = vadd.f32 %v1201, %v1577
        %v1681 = vadd.f32 %v1202, %v1579
        %v1682 = vadd.f32 %v1203, %v1581
        %v1683 = vadd.f32 %v1204, %v1583
        %v1684 = vadd.f32 %v1205, %v1585
        %v1685 = vadd.f32 %v1206, %v1587
        %v1686 = vadd.f32 %v1207, %v1589
        %v1687 = vadd.f32 %v1208, %v1591
        %v1688 = vadd.f32 %v1209, %v1593
        %v1689 = vadd.f32 %v1210, %v1595
        %v1690 = vadd.f32 %v1211, %v1597
        %v1691 = vadd.f32 %v1212, %v1599
        %v1692 = vadd.f32 %v1213, %v1601
        %v1693 = vadd.f32 %v1214, %v1603
        %v1694 = vadd.f32 %v1215, %v1605
        %v1695 = vadd.f32 %v1216, %v1607
        %v1696 = vadd.f32 %v1217, %v1609
        %v1697 = vadd.f32 %v1218, %v1611
        %v1698 = vadd.f32 %v1219, %v1613
        %v1699 = vadd.f32 %v1220, %v1615
        %v1700 = vadd.f32 %v1221, %v1617
        %v1701 = vadd.f32 %v1222, %v1619
        %v1702 = vadd.f32 %v1223, %v1621
        %v1703 = vadd.f32 %v1224, %v1623
        %v1704 = vadd.f32 %v1225, %v1625
        %v1705 = vadd.f32 %v1226, %v1627
        %v1706 = vadd.f32 %v1227, %v1629
        %v1707 = vadd.f32 %v1228, %v1631
        %v1708 = vadd.f32 %v1229, %v1633
        %v1709 = vadd.f32 %v1230, %v1635
        %v1710 = vadd.f32 %v1231, %v1637
        %v1711 = vadd.f32 %v1232, %v1639
        %v1712 = vld [vmem:[%s195 + $0x98] sm:$0x3]
        %v1713 = vld [vmem:[%s1] sm:$0x4]
        %v1714 = vunpack.c.l.bf16 %v1712
        %v1715 = vunpack.c.l.bf16 %v1713
        %1717 = vset.pattern.permute.xlu0 0
        %1718 = vperm.xlu0 %1717, %v1714
        %v1719 = vpop.permute.xlu0 %1718
        %v1721 = vperm.slane %v1715, 4
        %v1722 = vmul.f32 %v1310, %v1721
        %v1723 = vmul.f32 %v1315, %v1721
        %v1724 = vmul.f32 %v1320, %v1721
        %v1725 = vmul.f32 %v1325, %v1721
        %v1726 = vmul.f32 %v1330, %v1721
        %v1727 = vmul.f32 %v1335, %v1721
        %v1728 = vmul.f32 %v1340, %v1721
        %v1729 = vmul.f32 %v1345, %v1721
        %v1730 = vmul.f32 %v1350, %v1721
        %v1731 = vmul.f32 %v1355, %v1721
        %v1732 = vmul.f32 %v1360, %v1721
        %v1733 = vmul.f32 %v1365, %v1721
        %v1734 = vmul.f32 %v1370, %v1721
        %v1735 = vmul.f32 %v1375, %v1721
        %v1736 = vmul.f32 %v1380, %v1721
        %v1737 = vmul.f32 %v1385, %v1721
        %v1738 = vmul.f32 %v1390, %v1721
        %v1739 = vmul.f32 %v1395, %v1721
        %v1740 = vmul.f32 %v1400, %v1721
        %v1741 = vmul.f32 %v1405, %v1721
        %v1742 = vmul.f32 %v1410, %v1721
        %v1743 = vmul.f32 %v1415, %v1721
        %v1744 = vmul.f32 %v1420, %v1721
        %v1745 = vmul.f32 %v1425, %v1721
        %v1746 = vmul.f32 %v1430, %v1721
        %v1747 = vmul.f32 %v1435, %v1721
        %v1748 = vmul.f32 %v1440, %v1721
        %v1749 = vmul.f32 %v1445, %v1721
        %v1750 = vmul.f32 %v1450, %v1721
        %v1751 = vmul.f32 %v1455, %v1721
        %v1752 = vmul.f32 %v1460, %v1721
        %v1753 = vmul.f32 %v1465, %v1721
        %v1754 = vmul.f32 %v1470, %v1721
        %v1755 = vmul.f32 %v1475, %v1721
        %v1756 = vmul.f32 %v1480, %v1721
        %v1757 = vmul.f32 %v1485, %v1721
        %v1758 = vmul.f32 %v1719, %v1721
        %vm1796 = vcmask 1044480
        %v1797 = vrot.slane %v1722, 3
        %v1798 = vrot.slane %v1723, 3
        %v1799 = vsel %vm1796, %v1797, %v1798
        %v1800 = vrot.slane %v1724, 3
        %v1801 = vsel %vm1796, %v1798, %v1800
        %v1802 = vrot.slane %v1725, 3
        %v1803 = vsel %vm1796, %v1800, %v1802
        %v1804 = vrot.slane %v1726, 3
        %v1805 = vsel %vm1796, %v1802, %v1804
        %v1806 = vrot.slane %v1727, 3
        %v1807 = vsel %vm1796, %v1804, %v1806
        %v1808 = vrot.slane %v1728, 3
        %v1809 = vsel %vm1796, %v1806, %v1808
        %v1810 = vrot.slane %v1729, 3
        %v1811 = vsel %vm1796, %v1808, %v1810
        %v1812 = vrot.slane %v1730, 3
        %v1813 = vsel %vm1796, %v1810, %v1812
        %v1814 = vrot.slane %v1731, 3
        %v1815 = vsel %vm1796, %v1812, %v1814
        %v1816 = vrot.slane %v1732, 3
        %v1817 = vsel %vm1796, %v1814, %v1816
        %v1818 = vrot.slane %v1733, 3
        %v1819 = vsel %vm1796, %v1816, %v1818
        %v1820 = vrot.slane %v1734, 3
        %v1821 = vsel %vm1796, %v1818, %v1820
        %v1822 = vrot.slane %v1735, 3
        %v1823 = vsel %vm1796, %v1820, %v1822
        %v1824 = vrot.slane %v1736, 3
        %v1825 = vsel %vm1796, %v1822, %v1824
        %v1826 = vrot.slane %v1737, 3
        %v1827 = vsel %vm1796, %v1824, %v1826
        %v1828 = vrot.slane %v1738, 3
        %v1829 = vsel %vm1796, %v1826, %v1828
        %v1830 = vrot.slane %v1739, 3
        %v1831 = vsel %vm1796, %v1828, %v1830
        %v1832 = vrot.slane %v1740, 3
        %v1833 = vsel %vm1796, %v1830, %v1832
        %v1834 = vrot.slane %v1741, 3
        %v1835 = vsel %vm1796, %v1832, %v1834
        %v1836 = vrot.slane %v1742, 3
        %v1837 = vsel %vm1796, %v1834, %v1836
        %v1838 = vrot.slane %v1743, 3
        %v1839 = vsel %vm1796, %v1836, %v1838
        %v1840 = vrot.slane %v1744, 3
        %v1841 = vsel %vm1796, %v1838, %v1840
        %v1842 = vrot.slane %v1745, 3
        %v1843 = vsel %vm1796, %v1840, %v1842
        %v1844 = vrot.slane %v1746, 3
        %v1845 = vsel %vm1796, %v1842, %v1844
        %v1846 = vrot.slane %v1747, 3
        %v1847 = vsel %vm1796, %v1844, %v1846
        %v1848 = vrot.slane %v1748, 3
        %v1849 = vsel %vm1796, %v1846, %v1848
        %v1850 = vrot.slane %v1749, 3
        %v1851 = vsel %vm1796, %v1848, %v1850
        %v1852 = vrot.slane %v1750, 3
        %v1853 = vsel %vm1796, %v1850, %v1852
        %v1854 = vrot.slane %v1751, 3
        %v1855 = vsel %vm1796, %v1852, %v1854
        %v1856 = vrot.slane %v1752, 3
        %v1857 = vsel %vm1796, %v1854, %v1856
        %v1858 = vrot.slane %v1753, 3
        %v1859 = vsel %vm1796, %v1856, %v1858
        %v1860 = vrot.slane %v1754, 3
        %v1861 = vsel %vm1796, %v1858, %v1860
        %v1862 = vrot.slane %v1755, 3
        %v1863 = vsel %vm1796, %v1860, %v1862
        %v1864 = vrot.slane %v1756, 3
        %v1865 = vsel %vm1796, %v1862, %v1864
        %v1866 = vrot.slane %v1757, 3
        %v1867 = vsel %vm1796, %v1864, %v1866
        %v1868 = vrot.slane %v1758, 3
        %v1869 = vsel %vm1796, %v1866, %v1868
        %v1906 = vadd.f32 %v1676, %v1799
        %v1907 = vadd.f32 %v1677, %v1801
        %v1908 = vadd.f32 %v1678, %v1803
        %v1909 = vadd.f32 %v1679, %v1805
        %v1910 = vadd.f32 %v1680, %v1807
        %v1911 = vadd.f32 %v1681, %v1809
        %v1912 = vadd.f32 %v1682, %v1811
        %v1913 = vadd.f32 %v1683, %v1813
        %v1914 = vadd.f32 %v1684, %v1815
        %v1915 = vadd.f32 %v1685, %v1817
        %v1916 = vadd.f32 %v1686, %v1819
        %v1917 = vadd.f32 %v1687, %v1821
        %v1918 = vadd.f32 %v1688, %v1823
        %v1919 = vadd.f32 %v1689, %v1825
        %v1920 = vadd.f32 %v1690, %v1827
        %v1921 = vadd.f32 %v1691, %v1829
        %v1922 = vadd.f32 %v1692, %v1831
        %v1923 = vadd.f32 %v1693, %v1833
        %v1924 = vadd.f32 %v1694, %v1835
        %v1925 = vadd.f32 %v1695, %v1837
        %v1926 = vadd.f32 %v1696, %v1839
        %v1927 = vadd.f32 %v1697, %v1841
        %v1928 = vadd.f32 %v1698, %v1843
        %v1929 = vadd.f32 %v1699, %v1845
        %v1930 = vadd.f32 %v1700, %v1847
        %v1931 = vadd.f32 %v1701, %v1849
        %v1932 = vadd.f32 %v1702, %v1851
        %v1933 = vadd.f32 %v1703, %v1853
        %v1934 = vadd.f32 %v1704, %v1855
        %v1935 = vadd.f32 %v1705, %v1857
        %v1936 = vadd.f32 %v1706, %v1859
        %v1937 = vadd.f32 %v1707, %v1861
        %v1938 = vadd.f32 %v1708, %v1863
        %v1939 = vadd.f32 %v1709, %v1865
        %v1940 = vadd.f32 %v1710, %v1867
        %v1941 = vadd.f32 %v1711, %v1869
        %v1942 = vld [vmem:[%s195 + $0x8] sm:$0xc]
        %v1943 = vunpack.c.l.bf16 %v1942
        %1945 = vset.pattern.permute.xlu0 0
        %1946 = vperm.xlu0 %1945, %v1943
        %v1947 = vpop.permute.xlu0 %1946
        %v1949 = vperm.slane %v1715, 5
        %v1950 = vmul.f32 %v1947, %v1949
        %v1951 = vmul.f32 %v1315, %v1949
        %v1952 = vmul.f32 %v1320, %v1949
        %v1953 = vmul.f32 %v1325, %v1949
        %v1954 = vmul.f32 %v1330, %v1949
        %v1955 = vmul.f32 %v1335, %v1949
        %v1956 = vmul.f32 %v1340, %v1949
        %v1957 = vmul.f32 %v1345, %v1949
        %v1958 = vmul.f32 %v1350, %v1949
        %v1959 = vmul.f32 %v1355, %v1949
        %v1960 = vmul.f32 %v1360, %v1949
        %v1961 = vmul.f32 %v1365, %v1949
        %v1962 = vmul.f32 %v1370, %v1949
        %v1963 = vmul.f32 %v1375, %v1949
        %v1964 = vmul.f32 %v1380, %v1949
        %v1965 = vmul.f32 %v1385, %v1949
        %v1966 = vmul.f32 %v1390, %v1949
        %v1967 = vmul.f32 %v1395, %v1949
        %v1968 = vmul.f32 %v1400, %v1949
        %v1969 = vmul.f32 %v1405, %v1949
        %v1970 = vmul.f32 %v1410, %v1949
        %v1971 = vmul.f32 %v1415, %v1949
        %v1972 = vmul.f32 %v1420, %v1949
        %v1973 = vmul.f32 %v1425, %v1949
        %v1974 = vmul.f32 %v1430, %v1949
        %v1975 = vmul.f32 %v1435, %v1949
        %v1976 = vmul.f32 %v1440, %v1949
        %v1977 = vmul.f32 %v1445, %v1949
        %v1978 = vmul.f32 %v1450, %v1949
        %v1979 = vmul.f32 %v1455, %v1949
        %v1980 = vmul.f32 %v1460, %v1949
        %v1981 = vmul.f32 %v1465, %v1949
        %v1982 = vmul.f32 %v1470, %v1949
        %v1983 = vmul.f32 %v1475, %v1949
        %v1984 = vmul.f32 %v1480, %v1949
        %v1985 = vmul.f32 %v1485, %v1949
        %v1986 = vmul.f32 %v1719, %v1949
        %vm2024 = vcmask 1043456
        %v2025 = vrot.slane %v1950, 4
        %v2026 = vrot.slane %v1951, 4
        %v2027 = vsel %vm2024, %v2025, %v2026
        %v2028 = vrot.slane %v1952, 4
        %v2029 = vsel %vm2024, %v2026, %v2028
        %v2030 = vrot.slane %v1953, 4
        %v2031 = vsel %vm2024, %v2028, %v2030
        %v2032 = vrot.slane %v1954, 4
        %v2033 = vsel %vm2024, %v2030, %v2032
        %v2034 = vrot.slane %v1955, 4
        %v2035 = vsel %vm2024, %v2032, %v2034
        %v2036 = vrot.slane %v1956, 4
        %v2037 = vsel %vm2024, %v2034, %v2036
        %v2038 = vrot.slane %v1957, 4
        %v2039 = vsel %vm2024, %v2036, %v2038
        %v2040 = vrot.slane %v1958, 4
        %v2041 = vsel %vm2024, %v2038, %v2040
        %v2042 = vrot.slane %v1959, 4
        %v2043 = vsel %vm2024, %v2040, %v2042
        %v2044 = vrot.slane %v1960, 4
        %v2045 = vsel %vm2024, %v2042, %v2044
        %v2046 = vrot.slane %v1961, 4
        %v2047 = vsel %vm2024, %v2044, %v2046
        %v2048 = vrot.slane %v1962, 4
        %v2049 = vsel %vm2024, %v2046, %v2048
        %v2050 = vrot.slane %v1963, 4
        %v2051 = vsel %vm2024, %v2048, %v2050
        %v2052 = vrot.slane %v1964, 4
        %v2053 = vsel %vm2024, %v2050, %v2052
        %v2054 = vrot.slane %v1965, 4
        %v2055 = vsel %vm2024, %v2052, %v2054
        %v2056 = vrot.slane %v1966, 4
        %v2057 = vsel %vm2024, %v2054, %v2056
        %v2058 = vrot.slane %v1967, 4
        %v2059 = vsel %vm2024, %v2056, %v2058
        %v2060 = vrot.slane %v1968, 4
        %v2061 = vsel %vm2024, %v2058, %v2060
        %v2062 = vrot.slane %v1969, 4
        %v2063 = vsel %vm2024, %v2060, %v2062
        %v2064 = vrot.slane %v1970, 4
        %v2065 = vsel %vm2024, %v2062, %v2064
        %v2066 = vrot.slane %v1971, 4
        %v2067 = vsel %vm2024, %v2064, %v2066
        %v2068 = vrot.slane %v1972, 4
        %v2069 = vsel %vm2024, %v2066, %v2068
        %v2070 = vrot.slane %v1973, 4
        %v2071 = vsel %vm2024, %v2068, %v2070
        %v2072 = vrot.slane %v1974, 4
        %v2073 = vsel %vm2024, %v2070, %v2072
        %v2074 = vrot.slane %v1975, 4
        %v2075 = vsel %vm2024, %v2072, %v2074
        %v2076 = vrot.slane %v1976, 4
        %v2077 = vsel %vm2024, %v2074, %v2076
        %v2078 = vrot.slane %v1977, 4
        %v2079 = vsel %vm2024, %v2076, %v2078
        %v2080 = vrot.slane %v1978, 4
        %v2081 = vsel %vm2024, %v2078, %v2080
        %v2082 = vrot.slane %v1979, 4
        %v2083 = vsel %vm2024, %v2080, %v2082
        %v2084 = vrot.slane %v1980, 4
        %v2085 = vsel %vm2024, %v2082, %v2084
        %v2086 = vrot.slane %v1981, 4
        %v2087 = vsel %vm2024, %v2084, %v2086
        %v2088 = vrot.slane %v1982, 4
        %v2089 = vsel %vm2024, %v2086, %v2088
        %v2090 = vrot.slane %v1983, 4
        %v2091 = vsel %vm2024, %v2088, %v2090
        %v2092 = vrot.slane %v1984, 4
        %v2093 = vsel %vm2024, %v2090, %v2092
        %v2094 = vrot.slane %v1985, 4
        %v2095 = vsel %vm2024, %v2092, %v2094
        %v2096 = vrot.slane %v1986, 4
        %v2097 = vsel %vm2024, %v2094, %v2096
        %v2134 = vadd.f32 %v1906, %v2027
        %v2135 = vadd.f32 %v1907, %v2029
        %v2136 = vadd.f32 %v1908, %v2031
        %v2137 = vadd.f32 %v1909, %v2033
        %v2138 = vadd.f32 %v1910, %v2035
        %v2139 = vadd.f32 %v1911, %v2037
        %v2140 = vadd.f32 %v1912, %v2039
        %v2141 = vadd.f32 %v1913, %v2041
        %v2142 = vadd.f32 %v1914, %v2043
        %v2143 = vadd.f32 %v1915, %v2045
        %v2144 = vadd.f32 %v1916, %v2047
        %v2145 = vadd.f32 %v1917, %v2049
        %v2146 = vadd.f32 %v1918, %v2051
        %v2147 = vadd.f32 %v1919, %v2053
        %v2148 = vadd.f32 %v1920, %v2055
        %v2149 = vadd.f32 %v1921, %v2057
        %v2150 = vadd.f32 %v1922, %v2059
        %v2151 = vadd.f32 %v1923, %v2061
        %v2152 = vadd.f32 %v1924, %v2063
        %v2153 = vadd.f32 %v1925, %v2065
        %v2154 = vadd.f32 %v1926, %v2067
        %v2155 = vadd.f32 %v1927, %v2069
        %v2156 = vadd.f32 %v1928, %v2071
        %v2157 = vadd.f32 %v1929, %v2073
        %v2158 = vadd.f32 %v1930, %v2075
        %v2159 = vadd.f32 %v1931, %v2077
        %v2160 = vadd.f32 %v1932, %v2079
        %v2161 = vadd.f32 %v1933, %v2081
        %v2162 = vadd.f32 %v1934, %v2083
        %v2163 = vadd.f32 %v1935, %v2085
        %v2164 = vadd.f32 %v1936, %v2087
        %v2165 = vadd.f32 %v1937, %v2089
        %v2166 = vadd.f32 %v1938, %v2091
        %v2167 = vadd.f32 %v1939, %v2093
        %v2168 = vadd.f32 %v1940, %v2095
        %v2169 = vadd.f32 %v1941, %v2097
        %v2170 = vld [vmem:[%s195 + $0x10] sm:$0xc]
        %v2171 = vld [vmem:[%s195 + $0x14] sm:$0xf]
        %v2172 = vld [vmem:[%s195 + $0x18] sm:$0xf]
        %v2173 = vld [vmem:[%s195 + $0x1c] sm:$0xf]
        %v2174 = vld [vmem:[%s195 + $0x20] sm:$0xf]
        %v2175 = vld [vmem:[%s195 + $0x24] sm:$0xf]
        %v2176 = vld [vmem:[%s195 + $0x28] sm:$0xf]
        %v2177 = vld [vmem:[%s195 + $0x2c] sm:$0xf]
        %v2178 = vld [vmem:[%s195 + $0x30] sm:$0xf]
        %v2179 = vld [vmem:[%s195 + $0x34] sm:$0xf]
        %v2180 = vld [vmem:[%s195 + $0x38] sm:$0xf]
        %v2181 = vld [vmem:[%s195 + $0x3c] sm:$0xf]
        %v2182 = vld [vmem:[%s195 + $0x40] sm:$0xf]
        %v2183 = vld [vmem:[%s195 + $0x44] sm:$0xf]
        %v2184 = vld [vmem:[%s195 + $0x48] sm:$0xf]
        %v2185 = vld [vmem:[%s195 + $0x4c] sm:$0xf]
        %v2186 = vld [vmem:[%s195 + $0x50] sm:$0xf]
        %v2187 = vld [vmem:[%s195 + $0x54] sm:$0xf]
        %v2188 = vld [vmem:[%s195 + $0x58] sm:$0xf]
        %v2189 = vld [vmem:[%s195 + $0x5c] sm:$0xf]
        %v2190 = vld [vmem:[%s195 + $0x60] sm:$0xf]
        %v2191 = vld [vmem:[%s195 + $0x64] sm:$0xf]
        %v2192 = vld [vmem:[%s195 + $0x68] sm:$0xf]
        %v2193 = vld [vmem:[%s195 + $0x6c] sm:$0xf]
        %v2194 = vld [vmem:[%s195 + $0x70] sm:$0xf]
        %v2195 = vld [vmem:[%s195 + $0x74] sm:$0xf]
        %v2196 = vld [vmem:[%s195 + $0x78] sm:$0xf]
        %v2197 = vld [vmem:[%s195 + $0x7c] sm:$0xf]
        %v2198 = vld [vmem:[%s195 + $0x80] sm:$0xf]
        %v2199 = vld [vmem:[%s195 + $0x84] sm:$0xf]
        %v2200 = vld [vmem:[%s195 + $0x88] sm:$0xf]
        %v2201 = vld [vmem:[%s195 + $0x8c] sm:$0xf]
        %v2202 = vld [vmem:[%s195 + $0x90] sm:$0xf]
        %v2203 = vld [vmem:[%s195 + $0x94] sm:$0xf]
        %v2204 = vld [vmem:[%s195 + $0x98] sm:$0xf]
        %v2205 = vld [vmem:[%s195 + $0x9c] sm:$0xf]
        %v2206 = vld [vmem:[%s195 + $0xa0] sm:$0x3]
        %v2207 = vld [vmem:[%s1] sm:$0x8]
        %v2208 = vunpack.c.l.bf16 %v2170
        %v2209 = vunpack.c.l.bf16 %v2171
        %v2210 = vunpack.c.l.bf16 %v2172
        %v2211 = vunpack.c.l.bf16 %v2173
        %v2212 = vunpack.c.l.bf16 %v2174
        %v2213 = vunpack.c.l.bf16 %v2175
        %v2214 = vunpack.c.l.bf16 %v2176
        %v2215 = vunpack.c.l.bf16 %v2177
        %v2216 = vunpack.c.l.bf16 %v2178
        %v2217 = vunpack.c.l.bf16 %v2179
        %v2218 = vunpack.c.l.bf16 %v2180
        %v2219 = vunpack.c.l.bf16 %v2181
        %v2220 = vunpack.c.l.bf16 %v2182
        %v2221 = vunpack.c.l.bf16 %v2183
        %v2222 = vunpack.c.l.bf16 %v2184
        %v2223 = vunpack.c.l.bf16 %v2185
        %v2224 = vunpack.c.l.bf16 %v2186
        %v2225 = vunpack.c.l.bf16 %v2187
        %v2226 = vunpack.c.l.bf16 %v2188
        %v2227 = vunpack.c.l.bf16 %v2189
        %v2228 = vunpack.c.l.bf16 %v2190
        %v2229 = vunpack.c.l.bf16 %v2191
        %v2230 = vunpack.c.l.bf16 %v2192
        %v2231 = vunpack.c.l.bf16 %v2193
        %v2232 = vunpack.c.l.bf16 %v2194
        %v2233 = vunpack.c.l.bf16 %v2195
        %v2234 = vunpack.c.l.bf16 %v2196
        %v2235 = vunpack.c.l.bf16 %v2197
        %v2236 = vunpack.c.l.bf16 %v2198
        %v2237 = vunpack.c.l.bf16 %v2199
        %v2238 = vunpack.c.l.bf16 %v2200
        %v2239 = vunpack.c.l.bf16 %v2201
        %v2240 = vunpack.c.l.bf16 %v2202
        %v2241 = vunpack.c.l.bf16 %v2203
        %v2242 = vunpack.c.l.bf16 %v2204
        %v2243 = vunpack.c.l.bf16 %v2205
        %v2244 = vunpack.c.l.bf16 %v2206
        %v2245 = vunpack.c.l.bf16 %v2207
        %2247 = vset.pattern.permute.xlu0 0
        %2248 = vperm.xlu0 %2247, %v2208
        %v2249 = vpop.permute.xlu0 %2248
        %2252 = vset.pattern.permute.xlu0 0
        %2253 = vperm.xlu0 %2252, %v2209
        %v2254 = vpop.permute.xlu0 %2253
        %2257 = vset.pattern.permute.xlu0 0
        %2258 = vperm.xlu0 %2257, %v2210
        %v2259 = vpop.permute.xlu0 %2258
        %2262 = vset.pattern.permute.xlu0 0
        %2263 = vperm.xlu0 %2262, %v2211
        %v2264 = vpop.permute.xlu0 %2263
        %2267 = vset.pattern.permute.xlu0 0
        %2268 = vperm.xlu0 %2267, %v2212
        %v2269 = vpop.permute.xlu0 %2268
        %2272 = vset.pattern.permute.xlu0 0
        %2273 = vperm.xlu0 %2272, %v2213
        %v2274 = vpop.permute.xlu0 %2273
        %2277 = vset.pattern.permute.xlu0 0
        %2278 = vperm.xlu0 %2277, %v2214
        %v2279 = vpop.permute.xlu0 %2278
        %2282 = vset.pattern.permute.xlu0 0
        %2283 = vperm.xlu0 %2282, %v2215
        %v2284 = vpop.permute.xlu0 %2283
        %2287 = vset.pattern.permute.xlu0 0
        %2288 = vperm.xlu0 %2287, %v2216
        %v2289 = vpop.permute.xlu0 %2288
        %2292 = vset.pattern.permute.xlu0 0
        %2293 = vperm.xlu0 %2292, %v2217
        %v2294 = vpop.permute.xlu0 %2293
        %2297 = vset.pattern.permute.xlu0 0
        %2298 = vperm.xlu0 %2297, %v2218
        %v2299 = vpop.permute.xlu0 %2298
        %2302 = vset.pattern.permute.xlu0 0
        %2303 = vperm.xlu0 %2302, %v2219
        %v2304 = vpop.permute.xlu0 %2303
        %2307 = vset.pattern.permute.xlu0 0
        %2308 = vperm.xlu0 %2307, %v2220
        %v2309 = vpop.permute.xlu0 %2308
        %2312 = vset.pattern.permute.xlu0 0
        %2313 = vperm.xlu0 %2312, %v2221
        %v2314 = vpop.permute.xlu0 %2313
        %2317 = vset.pattern.permute.xlu0 0
        %2318 = vperm.xlu0 %2317, %v2222
        %v2319 = vpop.permute.xlu0 %2318
        %2322 = vset.pattern.permute.xlu0 0
        %2323 = vperm.xlu0 %2322, %v2223
        %v2324 = vpop.permute.xlu0 %2323
        %2327 = vset.pattern.permute.xlu0 0
        %2328 = vperm.xlu0 %2327, %v2224
        %v2329 = vpop.permute.xlu0 %2328
        %2332 = vset.pattern.permute.xlu0 0
        %2333 = vperm.xlu0 %2332, %v2225
        %v2334 = vpop.permute.xlu0 %2333
        %2337 = vset.pattern.permute.xlu0 0
        %2338 = vperm.xlu0 %2337, %v2226
        %v2339 = vpop.permute.xlu0 %2338
        %2342 = vset.pattern.permute.xlu0 0
        %2343 = vperm.xlu0 %2342, %v2227
        %v2344 = vpop.permute.xlu0 %2343
        %2347 = vset.pattern.permute.xlu0 0
        %2348 = vperm.xlu0 %2347, %v2228
        %v2349 = vpop.permute.xlu0 %2348
        %2352 = vset.pattern.permute.xlu0 0
        %2353 = vperm.xlu0 %2352, %v2229
        %v2354 = vpop.permute.xlu0 %2353
        %2357 = vset.pattern.permute.xlu0 0
        %2358 = vperm.xlu0 %2357, %v2230
        %v2359 = vpop.permute.xlu0 %2358
        %2362 = vset.pattern.permute.xlu0 0
        %2363 = vperm.xlu0 %2362, %v2231
        %v2364 = vpop.permute.xlu0 %2363
        %2367 = vset.pattern.permute.xlu0 0
        %2368 = vperm.xlu0 %2367, %v2232
        %v2369 = vpop.permute.xlu0 %2368
        %2372 = vset.pattern.permute.xlu0 0
        %2373 = vperm.xlu0 %2372, %v2233
        %v2374 = vpop.permute.xlu0 %2373
        %2377 = vset.pattern.permute.xlu0 0
        %2378 = vperm.xlu0 %2377, %v2234
        %v2379 = vpop.permute.xlu0 %2378
        %2382 = vset.pattern.permute.xlu0 0
        %2383 = vperm.xlu0 %2382, %v2235
        %v2384 = vpop.permute.xlu0 %2383
        %2387 = vset.pattern.permute.xlu0 0
        %2388 = vperm.xlu0 %2387, %v2236
        %v2389 = vpop.permute.xlu0 %2388
        %2392 = vset.pattern.permute.xlu0 0
        %2393 = vperm.xlu0 %2392, %v2237
        %v2394 = vpop.permute.xlu0 %2393
        %2397 = vset.pattern.permute.xlu0 0
        %2398 = vperm.xlu0 %2397, %v2238
        %v2399 = vpop.permute.xlu0 %2398
        %2402 = vset.pattern.permute.xlu0 0
        %2403 = vperm.xlu0 %2402, %v2239
        %v2404 = vpop.permute.xlu0 %2403
        %2407 = vset.pattern.permute.xlu0 0
        %2408 = vperm.xlu0 %2407, %v2240
        %v2409 = vpop.permute.xlu0 %2408
        %2412 = vset.pattern.permute.xlu0 0
        %2413 = vperm.xlu0 %2412, %v2241
        %v2414 = vpop.permute.xlu0 %2413
        %2417 = vset.pattern.permute.xlu0 0
        %2418 = vperm.xlu0 %2417, %v2242
        %v2419 = vpop.permute.xlu0 %2418
        %2422 = vset.pattern.permute.xlu0 0
        %2423 = vperm.xlu0 %2422, %v2243
        %v2424 = vpop.permute.xlu0 %2423
        %2427 = vset.pattern.permute.xlu0 0
        %2428 = vperm.xlu0 %2427, %v2244
        %v2429 = vpop.permute.xlu0 %2428
        %v2431 = vperm.slane %v2245, 6
        %v2432 = vmul.f32 %v2249, %v2431
        %v2433 = vmul.f32 %v2254, %v2431
        %v2434 = vmul.f32 %v2259, %v2431
        %v2435 = vmul.f32 %v2264, %v2431
        %v2436 = vmul.f32 %v2269, %v2431
        %v2437 = vmul.f32 %v2274, %v2431
        %v2438 = vmul.f32 %v2279, %v2431
        %v2439 = vmul.f32 %v2284, %v2431
        %v2440 = vmul.f32 %v2289, %v2431
        %v2441 = vmul.f32 %v2294, %v2431
        %v2442 = vmul.f32 %v2299, %v2431
        %v2443 = vmul.f32 %v2304, %v2431
        %v2444 = vmul.f32 %v2309, %v2431
        %v2445 = vmul.f32 %v2314, %v2431
        %v2446 = vmul.f32 %v2319, %v2431
        %v2447 = vmul.f32 %v2324, %v2431
        %v2448 = vmul.f32 %v2329, %v2431
        %v2449 = vmul.f32 %v2334, %v2431
        %v2450 = vmul.f32 %v2339, %v2431
        %v2451 = vmul.f32 %v2344, %v2431
        %v2452 = vmul.f32 %v2349, %v2431
        %v2453 = vmul.f32 %v2354, %v2431
        %v2454 = vmul.f32 %v2359, %v2431
        %v2455 = vmul.f32 %v2364, %v2431
        %v2456 = vmul.f32 %v2369, %v2431
        %v2457 = vmul.f32 %v2374, %v2431
        %v2458 = vmul.f32 %v2379, %v2431
        %v2459 = vmul.f32 %v2384, %v2431
        %v2460 = vmul.f32 %v2389, %v2431
        %v2461 = vmul.f32 %v2394, %v2431
        %v2462 = vmul.f32 %v2399, %v2431
        %v2463 = vmul.f32 %v2404, %v2431
        %v2464 = vmul.f32 %v2409, %v2431
        %v2465 = vmul.f32 %v2414, %v2431
        %v2466 = vmul.f32 %v2419, %v2431
        %v2467 = vmul.f32 %v2424, %v2431
        %v2468 = vmul.f32 %v2429, %v2431
        %v2506 = vrot.slane %v2432, 4
        %v2507 = vrot.slane %v2433, 4
        %v2508 = vsel %vm2024, %v2506, %v2507
        %v2509 = vrot.slane %v2434, 4
        %v2510 = vsel %vm2024, %v2507, %v2509
        %v2511 = vrot.slane %v2435, 4
        %v2512 = vsel %vm2024, %v2509, %v2511
        %v2513 = vrot.slane %v2436, 4
        %v2514 = vsel %vm2024, %v2511, %v2513
        %v2515 = vrot.slane %v2437, 4
        %v2516 = vsel %vm2024, %v2513, %v2515
        %v2517 = vrot.slane %v2438, 4
        %v2518 = vsel %vm2024, %v2515, %v2517
        %v2519 = vrot.slane %v2439, 4
        %v2520 = vsel %vm2024, %v2517, %v2519
        %v2521 = vrot.slane %v2440, 4
        %v2522 = vsel %vm2024, %v2519, %v2521
        %v2523 = vrot.slane %v2441, 4
        %v2524 = vsel %vm2024, %v2521, %v2523
        %v2525 = vrot.slane %v2442, 4
        %v2526 = vsel %vm2024, %v2523, %v2525
        %v2527 = vrot.slane %v2443, 4
        %v2528 = vsel %vm2024, %v2525, %v2527
        %v2529 = vrot.slane %v2444, 4
        %v2530 = vsel %vm2024, %v2527, %v2529
        %v2531 = vrot.slane %v2445, 4
        %v2532 = vsel %vm2024, %v2529, %v2531
        %v2533 = vrot.slane %v2446, 4
        %v2534 = vsel %vm2024, %v2531, %v2533
        %v2535 = vrot.slane %v2447, 4
        %v2536 = vsel %vm2024, %v2533, %v2535
        %v2537 = vrot.slane %v2448, 4
        %v2538 = vsel %vm2024, %v2535, %v2537
        %v2539 = vrot.slane %v2449, 4
        %v2540 = vsel %vm2024, %v2537, %v2539
        %v2541 = vrot.slane %v2450, 4
        %v2542 = vsel %vm2024, %v2539, %v2541
        %v2543 = vrot.slane %v2451, 4
        %v2544 = vsel %vm2024, %v2541, %v2543
        %v2545 = vrot.slane %v2452, 4
        %v2546 = vsel %vm2024, %v2543, %v2545
        %v2547 = vrot.slane %v2453, 4
        %v2548 = vsel %vm2024, %v2545, %v2547
        %v2549 = vrot.slane %v2454, 4
        %v2550 = vsel %vm2024, %v2547, %v2549
        %v2551 = vrot.slane %v2455, 4
        %v2552 = vsel %vm2024, %v2549, %v2551
        %v2553 = vrot.slane %v2456, 4
        %v2554 = vsel %vm2024, %v2551, %v2553
        %v2555 = vrot.slane %v2457, 4
        %v2556 = vsel %vm2024, %v2553, %v2555
        %v2557 = vrot.slane %v2458, 4
        %v2558 = vsel %vm2024, %v2555, %v2557
        %v2559 = vrot.slane %v2459, 4
        %v2560 = vsel %vm2024, %v2557, %v2559
        %v2561 = vrot.slane %v2460, 4
        %v2562 = vsel %vm2024, %v2559, %v2561
        %v2563 = vrot.slane %v2461, 4
        %v2564 = vsel %vm2024, %v2561, %v2563
        %v2565 = vrot.slane %v2462, 4
        %v2566 = vsel %vm2024, %v2563, %v2565
        %v2567 = vrot.slane %v2463, 4
        %v2568 = vsel %vm2024, %v2565, %v2567
        %v2569 = vrot.slane %v2464, 4
        %v2570 = vsel %vm2024, %v2567, %v2569
        %v2571 = vrot.slane %v2465, 4
        %v2572 = vsel %vm2024, %v2569, %v2571
        %v2573 = vrot.slane %v2466, 4
        %v2574 = vsel %vm2024, %v2571, %v2573
        %v2575 = vrot.slane %v2467, 4
        %v2576 = vsel %vm2024, %v2573, %v2575
        %v2577 = vrot.slane %v2468, 4
        %v2578 = vsel %vm2024, %v2575, %v2577
        %v2615 = vadd.f32 %v2134, %v2508
        %v2616 = vadd.f32 %v2135, %v2510
        %v2617 = vadd.f32 %v2136, %v2512
        %v2618 = vadd.f32 %v2137, %v2514
        %v2619 = vadd.f32 %v2138, %v2516
        %v2620 = vadd.f32 %v2139, %v2518
        %v2621 = vadd.f32 %v2140, %v2520
        %v2622 = vadd.f32 %v2141, %v2522
        %v2623 = vadd.f32 %v2142, %v2524
        %v2624 = vadd.f32 %v2143, %v2526
        %v2625 = vadd.f32 %v2144, %v2528
        %v2626 = vadd.f32 %v2145, %v2530
        %v2627 = vadd.f32 %v2146, %v2532
        %v2628 = vadd.f32 %v2147, %v2534
        %v2629 = vadd.f32 %v2148, %v2536
        %v2630 = vadd.f32 %v2149, %v2538
        %v2631 = vadd.f32 %v2150, %v2540
        %v2632 = vadd.f32 %v2151, %v2542
        %v2633 = vadd.f32 %v2152, %v2544
        %v2634 = vadd.f32 %v2153, %v2546
        %v2635 = vadd.f32 %v2154, %v2548
        %v2636 = vadd.f32 %v2155, %v2550
        %v2637 = vadd.f32 %v2156, %v2552
        %v2638 = vadd.f32 %v2157, %v2554
        %v2639 = vadd.f32 %v2158, %v2556
        %v2640 = vadd.f32 %v2159, %v2558
        %v2641 = vadd.f32 %v2160, %v2560
        %v2642 = vadd.f32 %v2161, %v2562
        %v2643 = vadd.f32 %v2162, %v2564
        %v2644 = vadd.f32 %v2163, %v2566
        %v2645 = vadd.f32 %v2164, %v2568
        %v2646 = vadd.f32 %v2165, %v2570
        %v2647 = vadd.f32 %v2166, %v2572
        %v2648 = vadd.f32 %v2167, %v2574
        %v2649 = vadd.f32 %v2168, %v2576
        %v2650 = vadd.f32 %v2169, %v2578
        %v2651 = vld [vmem:[%s195 + $0xa0] sm:$0x7]
        %v2652 = vunpack.c.l.bf16 %v2651
        %2654 = vset.pattern.permute.xlu0 0
        %2655 = vperm.xlu0 %2654, %v2652
        %v2656 = vpop.permute.xlu0 %2655
        %v2658 = vperm.slane %v2245, 7
        %v2659 = vmul.f32 %v2249, %v2658
        %v2660 = vmul.f32 %v2254, %v2658
        %v2661 = vmul.f32 %v2259, %v2658
        %v2662 = vmul.f32 %v2264, %v2658
        %v2663 = vmul.f32 %v2269, %v2658
        %v2664 = vmul.f32 %v2274, %v2658
        %v2665 = vmul.f32 %v2279, %v2658
        %v2666 = vmul.f32 %v2284, %v2658
        %v2667 = vmul.f32 %v2289, %v2658
        %v2668 = vmul.f32 %v2294, %v2658
        %v2669 = vmul.f32 %v2299, %v2658
        %v2670 = vmul.f32 %v2304, %v2658
        %v2671 = vmul.f32 %v2309, %v2658
        %v2672 = vmul.f32 %v2314, %v2658
        %v2673 = vmul.f32 %v2319, %v2658
        %v2674 = vmul.f32 %v2324, %v2658
        %v2675 = vmul.f32 %v2329, %v2658
        %v2676 = vmul.f32 %v2334, %v2658
        %v2677 = vmul.f32 %v2339, %v2658
        %v2678 = vmul.f32 %v2344, %v2658
        %v2679 = vmul.f32 %v2349, %v2658
        %v2680 = vmul.f32 %v2354, %v2658
        %v2681 = vmul.f32 %v2359, %v2658
        %v2682 = vmul.f32 %v2364, %v2658
        %v2683 = vmul.f32 %v2369, %v2658
        %v2684 = vmul.f32 %v2374, %v2658
        %v2685 = vmul.f32 %v2379, %v2658
        %v2686 = vmul.f32 %v2384, %v2658
        %v2687 = vmul.f32 %v2389, %v2658
        %v2688 = vmul.f32 %v2394, %v2658
        %v2689 = vmul.f32 %v2399, %v2658
        %v2690 = vmul.f32 %v2404, %v2658
        %v2691 = vmul.f32 %v2409, %v2658
        %v2692 = vmul.f32 %v2414, %v2658
        %v2693 = vmul.f32 %v2419, %v2658
        %v2694 = vmul.f32 %v2424, %v2658
        %v2695 = vmul.f32 %v2656, %v2658
        %vm2733 = vcmask 1042432
        %v2734 = vrot.slane %v2659, 5
        %v2735 = vrot.slane %v2660, 5
        %v2736 = vsel %vm2733, %v2734, %v2735
        %v2737 = vrot.slane %v2661, 5
        %v2738 = vsel %vm2733, %v2735, %v2737
        %v2739 = vrot.slane %v2662, 5
        %v2740 = vsel %vm2733, %v2737, %v2739
        %v2741 = vrot.slane %v2663, 5
        %v2742 = vsel %vm2733, %v2739, %v2741
        %v2743 = vrot.slane %v2664, 5
        %v2744 = vsel %vm2733, %v2741, %v2743
        %v2745 = vrot.slane %v2665, 5
        %v2746 = vsel %vm2733, %v2743, %v2745
        %v2747 = vrot.slane %v2666, 5
        %v2748 = vsel %vm2733, %v2745, %v2747
        %v2749 = vrot.slane %v2667, 5
        %v2750 = vsel %vm2733, %v2747, %v2749
        %v2751 = vrot.slane %v2668, 5
        %v2752 = vsel %vm2733, %v2749, %v2751
        %v2753 = vrot.slane %v2669, 5
        %v2754 = vsel %vm2733, %v2751, %v2753
        %v2755 = vrot.slane %v2670, 5
        %v2756 = vsel %vm2733, %v2753, %v2755
        %v2757 = vrot.slane %v2671, 5
        %v2758 = vsel %vm2733, %v2755, %v2757
        %v2759 = vrot.slane %v2672, 5
        %v2760 = vsel %vm2733, %v2757, %v2759
        %v2761 = vrot.slane %v2673, 5
        %v2762 = vsel %vm2733, %v2759, %v2761
        %v2763 = vrot.slane %v2674, 5
        %v2764 = vsel %vm2733, %v2761, %v2763
        %v2765 = vrot.slane %v2675, 5
        %v2766 = vsel %vm2733, %v2763, %v2765
        %v2767 = vrot.slane %v2676, 5
        %v2768 = vsel %vm2733, %v2765, %v2767
        %v2769 = vrot.slane %v2677, 5
        %v2770 = vsel %vm2733, %v2767, %v2769
        %v2771 = vrot.slane %v2678, 5
        %v2772 = vsel %vm2733, %v2769, %v2771
        %v2773 = vrot.slane %v2679, 5
        %v2774 = vsel %vm2733, %v2771, %v2773
        %v2775 = vrot.slane %v2680, 5
        %v2776 = vsel %vm2733, %v2773, %v2775
        %v2777 = vrot.slane %v2681, 5
        %v2778 = vsel %vm2733, %v2775, %v2777
        %v2779 = vrot.slane %v2682, 5
        %v2780 = vsel %vm2733, %v2777, %v2779
        %v2781 = vrot.slane %v2683, 5
        %v2782 = vsel %vm2733, %v2779, %v2781
        %v2783 = vrot.slane %v2684, 5
        %v2784 = vsel %vm2733, %v2781, %v2783
        %v2785 = vrot.slane %v2685, 5
        %v2786 = vsel %vm2733, %v2783, %v2785
        %v2787 = vrot.slane %v2686, 5
        %v2788 = vsel %vm2733, %v2785, %v2787
        %v2789 = vrot.slane %v2687, 5
        %v2790 = vsel %vm2733, %v2787, %v2789
        %v2791 = vrot.slane %v2688, 5
        %v2792 = vsel %vm2733, %v2789, %v2791
        %v2793 = vrot.slane %v2689, 5
        %v2794 = vsel %vm2733, %v2791, %v2793
        %v2795 = vrot.slane %v2690, 5
        %v2796 = vsel %vm2733, %v2793, %v2795
        %v2797 = vrot.slane %v2691, 5
        %v2798 = vsel %vm2733, %v2795, %v2797
        %v2799 = vrot.slane %v2692, 5
        %v2800 = vsel %vm2733, %v2797, %v2799
        %v2801 = vrot.slane %v2693, 5
        %v2802 = vsel %vm2733, %v2799, %v2801
        %v2803 = vrot.slane %v2694, 5
        %v2804 = vsel %vm2733, %v2801, %v2803
        %v2805 = vrot.slane %v2695, 5
        %v2806 = vsel %vm2733, %v2803, %v2805
        %v2843 = vadd.f32 %v2615, %v2736
        %v2844 = vadd.f32 %v2616, %v2738
        %v2845 = vadd.f32 %v2617, %v2740
        %v2846 = vadd.f32 %v2618, %v2742
        %v2847 = vadd.f32 %v2619, %v2744
        %v2848 = vadd.f32 %v2620, %v2746
        %v2849 = vadd.f32 %v2621, %v2748
        %v2850 = vadd.f32 %v2622, %v2750
        %v2851 = vadd.f32 %v2623, %v2752
        %v2852 = vadd.f32 %v2624, %v2754
        %v2853 = vadd.f32 %v2625, %v2756
        %v2854 = vadd.f32 %v2626, %v2758
        %v2855 = vadd.f32 %v2627, %v2760
        %v2856 = vadd.f32 %v2628, %v2762
        %v2857 = vadd.f32 %v2629, %v2764
        %v2858 = vadd.f32 %v2630, %v2766
        %v2859 = vadd.f32 %v2631, %v2768
        %v2860 = vadd.f32 %v2632, %v2770
        %v2861 = vadd.f32 %v2633, %v2772
        %v2862 = vadd.f32 %v2634, %v2774
        %v2863 = vadd.f32 %v2635, %v2776
        %v2864 = vadd.f32 %v2636, %v2778
        %v2865 = vadd.f32 %v2637, %v2780
        %v2866 = vadd.f32 %v2638, %v2782
        %v2867 = vadd.f32 %v2639, %v2784
        %v2868 = vadd.f32 %v2640, %v2786
        %v2869 = vadd.f32 %v2641, %v2788
        %v2870 = vadd.f32 %v2642, %v2790
        %v2871 = vadd.f32 %v2643, %v2792
        %v2872 = vadd.f32 %v2644, %v2794
        %v2873 = vadd.f32 %v2645, %v2796
        %v2874 = vadd.f32 %v2646, %v2798
        %v2875 = vadd.f32 %v2647, %v2800
        %v2876 = vadd.f32 %v2648, %v2802
        %v2877 = vadd.f32 %v2649, %v2804
        %v2878 = vadd.f32 %v2650, %v2806
        %v2879 = vld [vmem:[%s195 + $0x10] sm:$0x8]
        %v2880 = vld [vmem:[%s1 + $0x4] sm:$0x1]
        %v2881 = vunpack.c.l.bf16 %v2879
        %v2882 = vunpack.c.l.bf16 %v2880
        %2884 = vset.pattern.permute.xlu0 0
        %2885 = vperm.xlu0 %2884, %v2881
        %v2886 = vpop.permute.xlu0 %2885
        %v2888 = vperm.slane %v2882, 0
        %v2889 = vmul.f32 %v2886, %v2888
        %v2890 = vmul.f32 %v2254, %v2888
        %v2891 = vmul.f32 %v2259, %v2888
        %v2892 = vmul.f32 %v2264, %v2888
        %v2893 = vmul.f32 %v2269, %v2888
        %v2894 = vmul.f32 %v2274, %v2888
        %v2895 = vmul.f32 %v2279, %v2888
        %v2896 = vmul.f32 %v2284, %v2888
        %v2897 = vmul.f32 %v2289, %v2888
        %v2898 = vmul.f32 %v2294, %v2888
        %v2899 = vmul.f32 %v2299, %v2888
        %v2900 = vmul.f32 %v2304, %v2888
        %v2901 = vmul.f32 %v2309, %v2888
        %v2902 = vmul.f32 %v2314, %v2888
        %v2903 = vmul.f32 %v2319, %v2888
        %v2904 = vmul.f32 %v2324, %v2888
        %v2905 = vmul.f32 %v2329, %v2888
        %v2906 = vmul.f32 %v2334, %v2888
        %v2907 = vmul.f32 %v2339, %v2888
        %v2908 = vmul.f32 %v2344, %v2888
        %v2909 = vmul.f32 %v2349, %v2888
        %v2910 = vmul.f32 %v2354, %v2888
        %v2911 = vmul.f32 %v2359, %v2888
        %v2912 = vmul.f32 %v2364, %v2888
        %v2913 = vmul.f32 %v2369, %v2888
        %v2914 = vmul.f32 %v2374, %v2888
        %v2915 = vmul.f32 %v2379, %v2888
        %v2916 = vmul.f32 %v2384, %v2888
        %v2917 = vmul.f32 %v2389, %v2888
        %v2918 = vmul.f32 %v2394, %v2888
        %v2919 = vmul.f32 %v2399, %v2888
        %v2920 = vmul.f32 %v2404, %v2888
        %v2921 = vmul.f32 %v2409, %v2888
        %v2922 = vmul.f32 %v2414, %v2888
        %v2923 = vmul.f32 %v2419, %v2888
        %v2924 = vmul.f32 %v2424, %v2888
        %v2925 = vmul.f32 %v2656, %v2888
        %vm2963 = vcmask 1041408
        %v2964 = vrot.slane %v2889, 6
        %v2965 = vrot.slane %v2890, 6
        %v2966 = vsel %vm2963, %v2964, %v2965
        %v2967 = vrot.slane %v2891, 6
        %v2968 = vsel %vm2963, %v2965, %v2967
        %v2969 = vrot.slane %v2892, 6
        %v2970 = vsel %vm2963, %v2967, %v2969
        %v2971 = vrot.slane %v2893, 6
        %v2972 = vsel %vm2963, %v2969, %v2971
        %v2973 = vrot.slane %v2894, 6
        %v2974 = vsel %vm2963, %v2971, %v2973
        %v2975 = vrot.slane %v2895, 6
        %v2976 = vsel %vm2963, %v2973, %v2975
        %v2977 = vrot.slane %v2896, 6
        %v2978 = vsel %vm2963, %v2975, %v2977
        %v2979 = vrot.slane %v2897, 6
        %v2980 = vsel %vm2963, %v2977, %v2979
        %v2981 = vrot.slane %v2898, 6
        %v2982 = vsel %vm2963, %v2979, %v2981
        %v2983 = vrot.slane %v2899, 6
        %v2984 = vsel %vm2963, %v2981, %v2983
        %v2985 = vrot.slane %v2900, 6
        %v2986 = vsel %vm2963, %v2983, %v2985
        %v2987 = vrot.slane %v2901, 6
        %v2988 = vsel %vm2963, %v2985, %v2987
        %v2989 = vrot.slane %v2902, 6
        %v2990 = vsel %vm2963, %v2987, %v2989
        %v2991 = vrot.slane %v2903, 6
        %v2992 = vsel %vm2963, %v2989, %v2991
        %v2993 = vrot.slane %v2904, 6
        %v2994 = vsel %vm2963, %v2991, %v2993
        %v2995 = vrot.slane %v2905, 6
        %v2996 = vsel %vm2963, %v2993, %v2995
        %v2997 = vrot.slane %v2906, 6
        %v2998 = vsel %vm2963, %v2995, %v2997
        %v2999 = vrot.slane %v2907, 6
        %v3000 = vsel %vm2963, %v2997, %v2999
        %v3001 = vrot.slane %v2908, 6
        %v3002 = vsel %vm2963, %v2999, %v3001
        %v3003 = vrot.slane %v2909, 6
        %v3004 = vsel %vm2963, %v3001, %v3003
        %v3005 = vrot.slane %v2910, 6
        %v3006 = vsel %vm2963, %v3003, %v3005
        %v3007 = vrot.slane %v2911, 6
        %v3008 = vsel %vm2963, %v3005, %v3007
        %v3009 = vrot.slane %v2912, 6
        %v3010 = vsel %vm2963, %v3007, %v3009
        %v3011 = vrot.slane %v2913, 6
        %v3012 = vsel %vm2963, %v3009, %v3011
        %v3013 = vrot.slane %v2914, 6
        %v3014 = vsel %vm2963, %v3011, %v3013
        %v3015 = vrot.slane %v2915, 6
        %v3016 = vsel %vm2963, %v3013, %v3015
        %v3017 = vrot.slane %v2916, 6
        %v3018 = vsel %vm2963, %v3015, %v3017
        %v3019 = vrot.slane %v2917, 6
        %v3020 = vsel %vm2963, %v3017, %v3019
        %v3021 = vrot.slane %v2918, 6
        %v3022 = vsel %vm2963, %v3019, %v3021
        %v3023 = vrot.slane %v2919, 6
        %v3024 = vsel %vm2963, %v3021, %v3023
        %v3025 = vrot.slane %v2920, 6
        %v3026 = vsel %vm2963, %v3023, %v3025
        %v3027 = vrot.slane %v2921, 6
        %v3028 = vsel %vm2963, %v3025, %v3027
        %v3029 = vrot.slane %v2922, 6
        %v3030 = vsel %vm2963, %v3027, %v3029
        %v3031 = vrot.slane %v2923, 6
        %v3032 = vsel %vm2963, %v3029, %v3031
        %v3033 = vrot.slane %v2924, 6
        %v3034 = vsel %vm2963, %v3031, %v3033
        %v3035 = vrot.slane %v2925, 6
        %v3036 = vsel %vm2963, %v3033, %v3035
        %v3073 = vadd.f32 %v2843, %v2966
        %v3074 = vadd.f32 %v2844, %v2968
        %v3075 = vadd.f32 %v2845, %v2970
        %v3076 = vadd.f32 %v2846, %v2972
        %v3077 = vadd.f32 %v2847, %v2974
        %v3078 = vadd.f32 %v2848, %v2976
        %v3079 = vadd.f32 %v2849, %v2978
        %v3080 = vadd.f32 %v2850, %v2980
        %v3081 = vadd.f32 %v2851, %v2982
        %v3082 = vadd.f32 %v2852, %v2984
        %v3083 = vadd.f32 %v2853, %v2986
        %v3084 = vadd.f32 %v2854, %v2988
        %v3085 = vadd.f32 %v2855, %v2990
        %v3086 = vadd.f32 %v2856, %v2992
        %v3087 = vadd.f32 %v2857, %v2994
        %v3088 = vadd.f32 %v2858, %v2996
        %v3089 = vadd.f32 %v2859, %v2998
        %v3090 = vadd.f32 %v2860, %v3000
        %v3091 = vadd.f32 %v2861, %v3002
        %v3092 = vadd.f32 %v2862, %v3004
        %v3093 = vadd.f32 %v2863, %v3006
        %v3094 = vadd.f32 %v2864, %v3008
        %v3095 = vadd.f32 %v2865, %v3010
        %v3096 = vadd.f32 %v2866, %v3012
        %v3097 = vadd.f32 %v2867, %v3014
        %v3098 = vadd.f32 %v2868, %v3016
        %v3099 = vadd.f32 %v2869, %v3018
        %v3100 = vadd.f32 %v2870, %v3020
        %v3101 = vadd.f32 %v2871, %v3022
        %v3102 = vadd.f32 %v2872, %v3024
        %v3103 = vadd.f32 %v2873, %v3026
        %v3104 = vadd.f32 %v2874, %v3028
        %v3105 = vadd.f32 %v2875, %v3030
        %v3106 = vadd.f32 %v2876, %v3032
        %v3107 = vadd.f32 %v2877, %v3034
        %v3108 = vadd.f32 %v2878, %v3036
        %v3109 = vld [vmem:[%s2] sm:$0x1]
        %v3111 = vperm.slane %v3109, 0
        %v3113 = vmul.f32 %v3073, %v3111
        %v3114 = vmul.f32 %v3074, %v3111
        %v3115 = vmul.f32 %v3075, %v3111
        %v3116 = vmul.f32 %v3076, %v3111
        %v3117 = vmul.f32 %v3077, %v3111
        %v3118 = vmul.f32 %v3078, %v3111
        %v3119 = vmul.f32 %v3079, %v3111
        %v3120 = vmul.f32 %v3080, %v3111
        %v3121 = vmul.f32 %v3081, %v3111
        %v3122 = vmul.f32 %v3082, %v3111
        %v3123 = vmul.f32 %v3083, %v3111
        %v3124 = vmul.f32 %v3084, %v3111
        %v3125 = vmul.f32 %v3085, %v3111
        %v3126 = vmul.f32 %v3086, %v3111
        %v3127 = vmul.f32 %v3087, %v3111
        %v3128 = vmul.f32 %v3088, %v3111
        %v3129 = vmul.f32 %v3089, %v3111
        %v3130 = vmul.f32 %v3090, %v3111
        %v3131 = vmul.f32 %v3091, %v3111
        %v3132 = vmul.f32 %v3092, %v3111
        %v3133 = vmul.f32 %v3093, %v3111
        %v3134 = vmul.f32 %v3094, %v3111
        %v3135 = vmul.f32 %v3095, %v3111
        %v3136 = vmul.f32 %v3096, %v3111
        %v3137 = vmul.f32 %v3097, %v3111
        %v3138 = vmul.f32 %v3098, %v3111
        %v3139 = vmul.f32 %v3099, %v3111
        %v3140 = vmul.f32 %v3100, %v3111
        %v3141 = vmul.f32 %v3101, %v3111
        %v3142 = vmul.f32 %v3102, %v3111
        %v3143 = vmul.f32 %v3103, %v3111
        %v3144 = vmul.f32 %v3104, %v3111
        %v3145 = vmul.f32 %v3105, %v3111
        %v3146 = vmul.f32 %v3106, %v3111
        %v3147 = vmul.f32 %v3107, %v3111
        %v3148 = vmul.f32 %v3108, %v3111
        %v3149 = vld [vmem:[%s3] sm:$0x1]
        %v3151 = vperm.slane %v3149, 0
        %v3153 = vadd.f32 %v3113, %v3151
        %v3154 = vadd.f32 %v3114, %v3151
        %v3155 = vadd.f32 %v3115, %v3151
        %v3156 = vadd.f32 %v3116, %v3151
        %v3157 = vadd.f32 %v3117, %v3151
        %v3158 = vadd.f32 %v3118, %v3151
        %v3159 = vadd.f32 %v3119, %v3151
        %v3160 = vadd.f32 %v3120, %v3151
        %v3161 = vadd.f32 %v3121, %v3151
        %v3162 = vadd.f32 %v3122, %v3151
        %v3163 = vadd.f32 %v3123, %v3151
        %v3164 = vadd.f32 %v3124, %v3151
        %v3165 = vadd.f32 %v3125, %v3151
        %v3166 = vadd.f32 %v3126, %v3151
        %v3167 = vadd.f32 %v3127, %v3151
        %v3168 = vadd.f32 %v3128, %v3151
        %v3169 = vadd.f32 %v3129, %v3151
        %v3170 = vadd.f32 %v3130, %v3151
        %v3171 = vadd.f32 %v3131, %v3151
        %v3172 = vadd.f32 %v3132, %v3151
        %v3173 = vadd.f32 %v3133, %v3151
        %v3174 = vadd.f32 %v3134, %v3151
        %v3175 = vadd.f32 %v3135, %v3151
        %v3176 = vadd.f32 %v3136, %v3151
        %v3177 = vadd.f32 %v3137, %v3151
        %v3178 = vadd.f32 %v3138, %v3151
        %v3179 = vadd.f32 %v3139, %v3151
        %v3180 = vadd.f32 %v3140, %v3151
        %v3181 = vadd.f32 %v3141, %v3151
        %v3182 = vadd.f32 %v3142, %v3151
        %v3183 = vadd.f32 %v3143, %v3151
        %v3184 = vadd.f32 %v3144, %v3151
        %v3185 = vadd.f32 %v3145, %v3151
        %v3186 = vadd.f32 %v3146, %v3151
        %v3187 = vadd.f32 %v3147, %v3151
        %v3188 = vadd.f32 %v3148, %v3151
        %v3189 = vmax.f32 %v3153, 0.0
        %v3190 = vmax.f32 %v3154, 0.0
        %v3191 = vmax.f32 %v3155, 0.0
        %v3192 = vmax.f32 %v3156, 0.0
        %v3193 = vmax.f32 %v3157, 0.0
        %v3194 = vmax.f32 %v3158, 0.0
        %v3195 = vmax.f32 %v3159, 0.0
        %v3196 = vmax.f32 %v3160, 0.0
        %v3197 = vmax.f32 %v3161, 0.0
        %v3198 = vmax.f32 %v3162, 0.0
        %v3199 = vmax.f32 %v3163, 0.0
        %v3200 = vmax.f32 %v3164, 0.0
        %v3201 = vmax.f32 %v3165, 0.0
        %v3202 = vmax.f32 %v3166, 0.0
        %v3203 = vmax.f32 %v3167, 0.0
        %v3204 = vmax.f32 %v3168, 0.0
        %v3205 = vmax.f32 %v3169, 0.0
        %v3206 = vmax.f32 %v3170, 0.0
        %v3207 = vmax.f32 %v3171, 0.0
        %v3208 = vmax.f32 %v3172, 0.0
        %v3209 = vmax.f32 %v3173, 0.0
        %v3210 = vmax.f32 %v3174, 0.0
        %v3211 = vmax.f32 %v3175, 0.0
        %v3212 = vmax.f32 %v3176, 0.0
        %v3213 = vmax.f32 %v3177, 0.0
        %v3214 = vmax.f32 %v3178, 0.0
        %v3215 = vmax.f32 %v3179, 0.0
        %v3216 = vmax.f32 %v3180, 0.0
        %v3217 = vmax.f32 %v3181, 0.0
        %v3218 = vmax.f32 %v3182, 0.0
        %v3219 = vmax.f32 %v3183, 0.0
        %v3220 = vmax.f32 %v3184, 0.0
        %v3221 = vmax.f32 %v3185, 0.0
        %v3222 = vmax.f32 %v3186, 0.0
        %v3223 = vmax.f32 %v3187, 0.0
        %v3224 = vmax.f32 %v3188, 0.0
        %v3225 = vpack.c.bf16 %v3189, %v3189
        %v3226 = vpack.c.bf16 %v3190, %v3190
        %v3227 = vpack.c.bf16 %v3191, %v3191
        %v3228 = vpack.c.bf16 %v3192, %v3192
        %v3229 = vpack.c.bf16 %v3193, %v3193
        %v3230 = vpack.c.bf16 %v3194, %v3194
        %v3231 = vpack.c.bf16 %v3195, %v3195
        %v3232 = vpack.c.bf16 %v3196, %v3196
        %v3233 = vpack.c.bf16 %v3197, %v3197
        %v3234 = vpack.c.bf16 %v3198, %v3198
        %v3235 = vpack.c.bf16 %v3199, %v3199
        %v3236 = vpack.c.bf16 %v3200, %v3200
        %v3237 = vpack.c.bf16 %v3201, %v3201
        %v3238 = vpack.c.bf16 %v3202, %v3202
        %v3239 = vpack.c.bf16 %v3203, %v3203
        %v3240 = vpack.c.bf16 %v3204, %v3204
        %v3241 = vpack.c.bf16 %v3205, %v3205
        %v3242 = vpack.c.bf16 %v3206, %v3206
        %v3243 = vpack.c.bf16 %v3207, %v3207
        %v3244 = vpack.c.bf16 %v3208, %v3208
        %v3245 = vpack.c.bf16 %v3209, %v3209
        %v3246 = vpack.c.bf16 %v3210, %v3210
        %v3247 = vpack.c.bf16 %v3211, %v3211
        %v3248 = vpack.c.bf16 %v3212, %v3212
        %v3249 = vpack.c.bf16 %v3213, %v3213
        %v3250 = vpack.c.bf16 %v3214, %v3214
        %v3251 = vpack.c.bf16 %v3215, %v3215
        %v3252 = vpack.c.bf16 %v3216, %v3216
        %v3253 = vpack.c.bf16 %v3217, %v3217
        %v3254 = vpack.c.bf16 %v3218, %v3218
        %v3255 = vpack.c.bf16 %v3219, %v3219
        %v3256 = vpack.c.bf16 %v3220, %v3220
        %v3257 = vpack.c.bf16 %v3221, %v3221
        %v3258 = vpack.c.bf16 %v3222, %v3222
        %v3259 = vpack.c.bf16 %v3223, %v3223
        %v3260 = vpack.c.bf16 %v3224, %v3224
        %3261 = vst [vmem:[%s190] sm:$0xf] %v3225
        %3262 = vst [vmem:[%s190 + $0x4] sm:$0xf] %v3226
        %3263 = vst [vmem:[%s190 + $0x8] sm:$0xf] %v3227
        %3264 = vst [vmem:[%s190 + $0xc] sm:$0xf] %v3228
        %3265 = vst [vmem:[%s190 + $0x10] sm:$0xf] %v3229
        %3266 = vst [vmem:[%s190 + $0x14] sm:$0xf] %v3230
        %3267 = vst [vmem:[%s190 + $0x18] sm:$0xf] %v3231
        %3268 = vst [vmem:[%s190 + $0x1c] sm:$0xf] %v3232
        %3269 = vst [vmem:[%s190 + $0x20] sm:$0xf] %v3233
        %3270 = vst [vmem:[%s190 + $0x24] sm:$0xf] %v3234
        %3271 = vst [vmem:[%s190 + $0x28] sm:$0xf] %v3235
        %3272 = vst [vmem:[%s190 + $0x2c] sm:$0xf] %v3236
        %3273 = vst [vmem:[%s190 + $0x30] sm:$0xf] %v3237
        %3274 = vst [vmem:[%s190 + $0x34] sm:$0xf] %v3238
        %3275 = vst [vmem:[%s190 + $0x38] sm:$0xf] %v3239
        %3276 = vst [vmem:[%s190 + $0x3c] sm:$0xf] %v3240
        %3277 = vst [vmem:[%s190 + $0x40] sm:$0xf] %v3241
        %3278 = vst [vmem:[%s190 + $0x44] sm:$0xf] %v3242
        %3279 = vst [vmem:[%s190 + $0x48] sm:$0xf] %v3243
        %3280 = vst [vmem:[%s190 + $0x4c] sm:$0xf] %v3244
        %3281 = vst [vmem:[%s190 + $0x50] sm:$0xf] %v3245
        %3282 = vst [vmem:[%s190 + $0x54] sm:$0xf] %v3246
        %3283 = vst [vmem:[%s190 + $0x58] sm:$0xf] %v3247
        %3284 = vst [vmem:[%s190 + $0x5c] sm:$0xf] %v3248
        %3285 = vst [vmem:[%s190 + $0x60] sm:$0xf] %v3249
        %3286 = vst [vmem:[%s190 + $0x64] sm:$0xf] %v3250
        %3287 = vst [vmem:[%s190 + $0x68] sm:$0xf] %v3251
        %3288 = vst [vmem:[%s190 + $0x6c] sm:$0xf] %v3252
        %3289 = vst [vmem:[%s190 + $0x70] sm:$0xf] %v3253
        %3290 = vst [vmem:[%s190 + $0x74] sm:$0xf] %v3254
        %3291 = vst [vmem:[%s190 + $0x78] sm:$0xf] %v3255
        %3292 = vst [vmem:[%s190 + $0x7c] sm:$0xf] %v3256
        %3293 = vst [vmem:[%s190 + $0x80] sm:$0xf] %v3257
        %3294 = vst [vmem:[%s190 + $0x84] sm:$0xf] %v3258
        %3295 = vst [vmem:[%s190 + $0x88] sm:$0xf] %v3259
        %3296 = vst [vmem:[%s190 + $0x8c] sm:$0xf] %v3260
        %s3297 = sand.u32 %s115, 1
        %s3298 = scalar_lea.sflag [#allocation3], %s3297
        %s3299 = sand.u32 %s115, 1
        %s3300 = smul.addr %s3299, 144
        %s3301 = scalar_lea.vmem [#allocation2], %s3300
        // Predicated region
        $region37: #{tpu_custom_call.1} parent=35 // pred_check
          %p3302 = pneg %p125
        $region38: #{tpu_custom_call.1} parent=35 // pred_check_branch
          %3304 = sbr.rel (%p3302) target = $region40
        $region39: #{tpu_custom_call.1} parent=35 // pred_region
          %3306 = vsyncadd %s3298, 0
          %s3307 = smul.addr %s18, 36
          %s3308 = smul.addr %s3307, 4
          %s3309 = scalar_lea.hbm %s4, %s3308
          %s3310 = sshll.u32 %s3301, 4
          %s3311 = int_to_ptr.vmem [resolvable:$true] %s3310
          %s3312 = sshll.u32 %s3309, 4
          %s3313 = int_to_ptr.hbm [resolvable:$true] %s3312
          %3318 = dma.vmem_to_hbm [thread:$0]  %s3311, 2304, %s3313, %s3298, 64, 64, 4
        $region40: #{tpu_custom_call.1} parent=35 // pred_fallthru
          _
      $region36: #{tpu_custom_call.1} parent=5 // pred_fallthru
        _
      %p3319 = scmp.le.s32.totalorder 2, %s13
      // Predicated region
      $region41: #{tpu_custom_call.1} parent=5 // pred_check
        %p3320 = pneg %p3319
      $region42: #{tpu_custom_call.1} parent=5 // pred_check_branch
        %3322 = sbr.rel (%p3320) target = $region44
      $region43: #{tpu_custom_call.1} parent=5 // pred_region
        %s3323 = ssub.s32 %s13, 2
        // Predicated region
        $region45: #{tpu_custom_call.1} parent=43 // pred_check
          %p3324 = pneg %p131
        $region46: #{tpu_custom_call.1} parent=43 // pred_check_branch
          %3326 = sbr.rel (%p3324) target = $region48
        $region47: #{tpu_custom_call.1} parent=43 // pred_region
          %s3327 = sand.u32 %s116, 1
          %s3328 = scalar_lea.sflag [#allocation3], %s3327
          %s3329 = sand.u32 %s116, 1
          %s3330 = smul.addr %s3329, 144
          %s3331 = scalar_lea.vmem [#allocation2], %s3330
          %3333 = dma.done %s3328, 2304
        $region48: #{tpu_custom_call.1} parent=43 // pred_fallthru
          _
      $region44: #{tpu_custom_call.1} parent=5 // pred_fallthru
        _
    $region6: #{tpu_custom_call.1} parent=1 // loop_footer
      %s17 = sadd.s32 1, %s13
    $region7: #{tpu_custom_call.1} parent=1 // loop_footer_branch
      %12 = sbr.rel target = $region3
    $region8: #{tpu_custom_call.1} parent=1 // loop_exit
      _
    %3334 = vsyncpa [#allocation3], 1
    %s3335 = scalar_lea.sflag [#allocation3], 1
    %3336 = vsyncpa %s3335, 1

</llo_original>
